<compile_context>
chip_gen: v6e
topology: v6e:2x2x1
jax: 0.10.0
libtpu: 0.0.40
codegen_flags: <defaults>
</compile_context>

<pallas_src>
import functools

import numpy as np
import jax
import jax.numpy as jnp
from jax import lax
from jax.experimental import pallas as pl
from jax.experimental.pallas import tpu as pltpu


def _round_up(x, m):
    return (x + m - 1) // m * m


# ---------------------------------------------------------------------------
# Fused BottleNeck kernel
# ---------------------------------------------------------------------------
def _bottleneck_kernel(alpha_ref, x_ref, w1_ref, b1_ref, wd_ref, b2_ref,
                       w3_ref, b3_ref, o_ref, t1_ref, *,
                       H, W, Ho, Wo, stride, pad, lpad):
    f32 = jnp.float32
    Cb = t1_ref.shape[-1]          # bottleneck width, padded to 128 lanes
    Hs, Ws = t1_ref.shape[0], t1_ref.shape[1]
    a1 = alpha_ref[0]              # PReLU alphas from SMEM (no recompile)
    a2 = alpha_ref[1]

    # ---- stage 1: 1x1 conv (channel matmul) + folded-BN bias + PReLU ------
    # DEFAULT MXU precision (no 'highest' multi-pass emulation); f32 accum.
    x = x_ref[0]                                             # (H*W, Cin_p)
    z1 = jnp.dot(x, w1_ref[...], preferred_element_type=f32)
    z1 = z1 + b1_ref[...]
    z1 = jnp.where(z1 >= 0, z1, a1 * z1)                     # (H*W, Cb) f32

    # Keep the expanded activation resident in VMEM inside a zero ring so the
    # depthwise "same" padding needs no HBM pad.  The image interior sits at
    # sublane-aligned column `lpad` (8), so the big store is unmasked; the
    # left/right rings are zeroed as aligned 8-wide bands.
    # (Ring is re-zeroed every step: with a 'parallel' batch axis a core's
    #  first iteration may have any program_id, so init-at-step-0 is unsafe.)
    if pad > 0:
        t1_ref[0:pad, :, :] = jnp.zeros((pad, Ws, Cb), f32)
        t1_ref[Hs - pad:Hs, :, :] = jnp.zeros((pad, Ws, Cb), f32)
        t1_ref[:, 0:lpad, :] = jnp.zeros((Hs, lpad, Cb), f32)
        t1_ref[:, lpad + W:Ws, :] = jnp.zeros((Hs, Ws - lpad - W, Cb), f32)
    t1_ref[pad:pad + H, lpad:lpad + W, :] = z1.reshape(H, W, Cb)

    # ---- stage 2: depthwise 3x3 (stride s) + folded-BN bias + PReLU -------
    wd = wd_ref[...]                                         # (9, Cb) f32
    c0 = lpad - pad
    acc = None
    for kh in range(3):
        rows = slice(kh, kh + Ho) if stride == 1 else pl.ds(kh, Ho, stride)
        for kw in range(3):
            if stride == 1:
                tap = t1_ref[rows, c0 + kw:c0 + kw + Wo, :]
            else:
                tap = t1_ref[rows, pl.ds(c0 + kw, Wo, stride), :]
            term = tap * wd[3 * kh + kw]
            acc = term if acc is None else acc + term        # first tap inits
    z2 = acc + b2_ref[...]
    z2 = jnp.where(z2 >= 0, z2, a2 * z2)                     # (Ho, Wo, Cb)

    # ---- stage 3: 1x1 conv (channel matmul) + folded-BN bias (no act) -----
    z2m = z2.reshape(Ho * Wo, Cb).astype(w3_ref.dtype)
    z3 = jnp.dot(z2m, w3_ref[...], preferred_element_type=f32)
    o_ref[0] = (z3 + b3_ref[...]).astype(o_ref.dtype)


# ---------------------------------------------------------------------------
# Wrapper
# ---------------------------------------------------------------------------
def _fold_bn(gamma, beta, mean, var, eps=1e-5):
    scale = gamma / jnp.sqrt(var + eps)
    bias = beta - mean * scale
    return scale, bias


def _tile_padded_bytes(shape, dtype):
    """Bytes of a block once Mosaic pads the last dim to 128 lanes and the
    second-to-last dim to 8 (f32) / 16 (bf16) / 32 (i8) sublanes."""
    item = np.dtype(dtype).itemsize
    dims = list(shape)
    dims[-1] = _round_up(dims[-1], 128)
    if len(dims) >= 2:
        dims[-2] = _round_up(dims[-2], 8 * max(1, 4 // item))
    size = 1
    for d in dims:
        size *= int(d)
    return size * item


@functools.partial(jax.jit, static_argnames=("stride", "padding", "act_dtype"))
def fused_bottleneck(x_nhwc, params, *, stride, padding,
                     act_dtype=jnp.bfloat16):
    """One MobileNetV2 BottleNeck as a single fused Pallas kernel.

    NHWC in / NHWC out; channel dims are zero-padded to multiples of 128 so
    every DMA, load and store is lane-dense.  The returned activation keeps
    the padded channel count (pad region is exactly zero), so chained blocks
    consume it directly; slice `[..., :Cout]` only at the very end.
    """
    N, H, W, Cx = x_nhwc.shape
    Cin, Cb = params["w1"].shape
    Cout = params["w3"].shape[1]
    Cin_p, Cb_p, Cout_p = (_round_up(c, 128) for c in (Cin, Cb, Cout))
    Ho = (H + 2 * padding - 3) // stride + 1
    Wo = (W + 2 * padding - 3) // stride + 1
    lpad = 8 if padding > 0 else 0                   # sublane-aligned interior
    Hs = H + 2 * padding
    Ws = _round_up(lpad + W + padding, 8)

    # Fold BN (inference running stats) into the conv weights; pad channels
    # with zeros to 128-lane multiples (padded channels stay exactly zero
    # through PReLU/depthwise/1x1, so chaining and final slicing are exact).
    s1, b1 = _fold_bn(**params["bn1"])
    s2, b2 = _fold_bn(**params["bn2"])
    s3, b3 = _fold_bn(**params["bn3"])
    w1 = jnp.pad(params["w1"] * s1[None, :],
                 ((0, Cin_p - Cin), (0, Cb_p - Cb))).astype(act_dtype)
    wd = jnp.pad((params["wd"] * s2[None, None, :]).reshape(9, Cb),
                 ((0, 0), (0, Cb_p - Cb))).astype(jnp.float32)
    w3 = jnp.pad(params["w3"] * s3[None, :],
                 ((0, Cb_p - Cb), (0, Cout_p - Cout))).astype(act_dtype)
    b1 = jnp.pad(b1, (0, Cb_p - Cb))[None, :].astype(jnp.float32)
    b2 = jnp.pad(b2, (0, Cb_p - Cb))[None, :].astype(jnp.float32)
    b3 = jnp.pad(b3, (0, Cout_p - Cout))[None, :].astype(jnp.float32)
    alphas = jnp.stack([jnp.asarray(params["alpha1"], jnp.float32),
                        jnp.asarray(params["alpha2"], jnp.float32)])

    # Accept either raw-channel or already channel-padded activations.
    if Cx == Cin and Cin_p != Cin:
        x_nhwc = jnp.pad(x_nhwc, ((0, 0), (0, 0), (0, 0), (0, Cin_p - Cin)))
    elif Cx != Cin_p:
        raise ValueError(f"expected {Cin} or {Cin_p} input channels, got {Cx}")
    # Free reshape of contiguous NHWC: rows = flattened spatial, lanes dense.
    x = x_nhwc.reshape(N, H * W, Cin_p).astype(act_dtype)

    # VMEM budget from tile-padded sizes (double-buffered blocks + scratch).
    blocks = [((1, H * W, Cin_p), act_dtype),
              ((Cin_p, Cb_p), act_dtype), ((1, Cb_p), jnp.float32),
              ((9, Cb_p), jnp.float32), ((1, Cb_p), jnp.float32),
              ((Cb_p, Cout_p), act_dtype), ((1, Cout_p), jnp.float32),
              ((1, Ho * Wo, Cout_p), act_dtype)]
    need = 2 * sum(_tile_padded_bytes(s, d) for s, d in blocks)
    need += _tile_padded_bytes((Hs, Ws, Cb_p), jnp.float32)
    need += 2 << 20                                          # internal slack
    vmem_limit = int(min(max(need, 32 << 20), 112 << 20))

    kernel = functools.partial(_bottleneck_kernel, H=H, W=W, Ho=Ho, Wo=Wo,
                               stride=stride, pad=padding, lpad=lpad)

    out = pl.pallas_call(
        kernel,
        out_shape=jax.ShapeDtypeStruct((N, Ho * Wo, Cout_p), act_dtype),
        grid=(N,),
        in_specs=[
            pl.BlockSpec(memory_space=pltpu.MemorySpace.SMEM),     # alphas
            pl.BlockSpec((1, H * W, Cin_p), lambda n: (n, 0, 0)),  # x
            pl.BlockSpec((Cin_p, Cb_p), lambda n: (0, 0)),         # w1 folded
            pl.BlockSpec((1, Cb_p), lambda n: (0, 0)),             # b1
            pl.BlockSpec((9, Cb_p), lambda n: (0, 0)),             # wd folded
            pl.BlockSpec((1, Cb_p), lambda n: (0, 0)),             # b2
            pl.BlockSpec((Cb_p, Cout_p), lambda n: (0, 0)),        # w3 folded
            pl.BlockSpec((1, Cout_p), lambda n: (0, 0)),           # b3
        ],
        out_specs=pl.BlockSpec((1, Ho * Wo, Cout_p), lambda n: (n, 0, 0)),
        scratch_shapes=[pltpu.VMEM((Hs, Ws, Cb_p), jnp.float32)],
        compiler_params=pltpu.CompilerParams(
            dimension_semantics=("parallel",),   # megacore / v7x 2-TC split
            vmem_limit_bytes=vmem_limit),
    )(alphas, x, w1, b1, wd, b2, w3, b3)

    return out.reshape(N, Ho, Wo, Cout_p)


# ---------------------------------------------------------------------------
# Parameters
# ---------------------------------------------------------------------------
def init_params(key, cin, cb, cout):
    ks = jax.random.split(key, 6)

    def bn(k, c):
        k1, k2, k3, k4 = jax.random.split(k, 4)
        return dict(
            gamma=jax.random.uniform(k1, (c,), jnp.float32, 0.5, 1.5),
            beta=jax.random.normal(k2, (c,), jnp.float32) * 0.1,
            mean=jax.random.normal(k3, (c,), jnp.float32) * 0.1,
            var=jax.random.uniform(k4, (c,), jnp.float32, 0.5, 1.5),
        )

    return {
        "w1": jax.random.normal(ks[0], (cin, cb), jnp.float32) / jnp.sqrt(cin),
        "wd": jax.random.normal(ks[1], (3, 3, cb), jnp.float32) / 3.0,
        "w3": jax.random.normal(ks[2], (cb, cout), jnp.float32) / jnp.sqrt(cb),
        "bn1": bn(ks[3], cb),
        "bn2": bn(ks[4], cb),
        "bn3": bn(ks[5], cout),
        "alpha1": 0.25,  # nn.PReLU() default (single shared parameter)
        "alpha2": 0.25,
    }


# ---------------------------------------------------------------------------
# Pure-JAX reference (for correctness check) — full f32 precision.
# ---------------------------------------------------------------------------
def reference_bottleneck(x_nchw, p, *, stride, padding):
    prec = lax.Precision.HIGHEST

    def bn(z, q):
        sc = q["gamma"] / jnp.sqrt(q["var"] + 1e-5)
        return (z * sc[None, :, None, None]
                + (q["beta"] - q["mean"] * sc)[None, :, None, None])

    def prelu(z, a):
        return jnp.where(z >= 0, z, a * z)

    dn = ("NCHW", "OIHW", "NCHW")
    w1 = jnp.transpose(p["w1"], (1, 0))[:, :, None, None]
    z = lax.conv_general_dilated(x_nchw, w1, (1, 1), "VALID",
                                 dimension_numbers=dn, precision=prec)
    z = prelu(bn(z, p["bn1"]), p["alpha1"])

    cb = p["w1"].shape[1]
    wd = jnp.transpose(p["wd"], (2, 0, 1))[:, None, :, :]
    z = lax.conv_general_dilated(
        z, wd, (stride, stride), [(padding, padding), (padding, padding)],
        dimension_numbers=dn, feature_group_count=cb, precision=prec)
    z = prelu(bn(z, p["bn2"]), p["alpha2"])

    w3 = jnp.transpose(p["w3"], (1, 0))[:, :, None, None]
    z = lax.conv_general_dilated(z, w3, (1, 1), "VALID",
                                 dimension_numbers=dn, precision=prec)
    return bn(z, p["bn3"])


if __name__ == "__main__":
    key = jax.random.PRNGKey(0)
    kx, kpa, kpb = jax.random.split(key, 3)

    # Two chained blocks from the front of MobileNetV2's trunk:
    #   BottleNeck(32, 32, 16, stride=1, padding=1)
    #   BottleNeck(16, 96, 24, stride=2, padding=1)
    N, H, W = 2, 16, 16
    x_nchw = jax.random.normal(kx, (N, 32, H, W), jnp.float32)
    pa = init_params(kpa, 32, 32, 16)
    pb = init_params(kpb, 16, 96, 24)

    # Pure-JAX reference (HIGHEST-precision convs).
    ra = reference_bottleneck(x_nchw, pa, stride=1, padding=1)
    ref = reference_bottleneck(ra, pb, stride=2, padding=1)

    # Pallas path, f32 storage (kernel matmuls at DEFAULT MXU precision).
    x = jnp.transpose(x_nchw, (0, 2, 3, 1))
    ya = fused_bottleneck(x, pa, stride=1, padding=1, act_dtype=jnp.float32)
    yb = fused_bottleneck(ya, pb, stride=2, padding=1, act_dtype=jnp.float32)
    out = jax.block_until_ready(jnp.transpose(yb[..., :24], (0, 3, 1, 2)))
    assert out.shape == (N, 24, 8, 8), out.shape
    err = float(jnp.max(jnp.abs(out - ref)))
    assert jnp.allclose(out, ref, rtol=1e-1, atol=1e-1), err

    # Pallas path, bf16 storage (the default): halves HBM traffic & VMEM.
    ya16 = fused_bottleneck(x, pa, stride=1, padding=1)
    yb16 = fused_bottleneck(ya16, pb, stride=2, padding=1)
    out16 = jax.block_until_ready(
        jnp.transpose(yb16[..., :24].astype(jnp.float32), (0, 3, 1, 2)))
    err16 = float(jnp.max(jnp.abs(out16 - ref)))
    assert jnp.allclose(out16, ref, rtol=1.5e-1, atol=1.5e-1), err16

    print("KERNEL_OK")
</pallas_src>

<mosaic_0001>
module attributes {stable_mosaic.version = 11 : i64} {
  func.func @_bottleneck_kernel(%arg0: i32, %arg1: memref<2xf32, #tpu.memory_space<smem>>, %arg2: memref<1x256x128xf32, #tpu.memory_space<vmem>>, %arg3: memref<128x128xf32, #tpu.memory_space<vmem>>, %arg4: memref<1x128xf32, #tpu.memory_space<vmem>>, %arg5: memref<9x128xf32, #tpu.memory_space<vmem>>, %arg6: memref<1x128xf32, #tpu.memory_space<vmem>>, %arg7: memref<128x128xf32, #tpu.memory_space<vmem>>, %arg8: memref<1x128xf32, #tpu.memory_space<vmem>>, %arg9: memref<1x256x128xf32, #tpu.memory_space<vmem>>, %arg10: memref<18x32x128xf32, #tpu.memory_space<vmem>>) attributes {dimension_semantics = [#tpu.dimension_semantics<parallel>], iteration_bounds = array<i64: 2>, scalar_prefetch = 0 : i64, scratch_operands = 1 : i64, tpu.core_type = #tpu.core_type<tc>, window_params = [{transform_indices = @transform_0, window_bounds = array<i64: 2>}, {transform_indices = @transform_1, window_bounds = array<i64: 1, 256, 128>}, {pipeline_mode = #tpu.pipeline_mode<synchronous>, transform_indices = @transform_2, window_bounds = array<i64: 128, 128>}, {pipeline_mode = #tpu.pipeline_mode<synchronous>, transform_indices = @transform_3, window_bounds = array<i64: 1, 128>}, {pipeline_mode = #tpu.pipeline_mode<synchronous>, transform_indices = @transform_4, window_bounds = array<i64: 9, 128>}, {pipeline_mode = #tpu.pipeline_mode<synchronous>, transform_indices = @transform_5, window_bounds = array<i64: 1, 128>}, {pipeline_mode = #tpu.pipeline_mode<synchronous>, transform_indices = @transform_6, window_bounds = array<i64: 128, 128>}, {pipeline_mode = #tpu.pipeline_mode<synchronous>, transform_indices = @transform_7, window_bounds = array<i64: 1, 128>}, {transform_indices = @transform_8, window_bounds = array<i64: 1, 256, 128>}]} {
    %c0 = arith.constant 0 : index
    %0 = memref.load %arg1[%c0] : memref<2xf32, #tpu.memory_space<smem>>
    %c1 = arith.constant 1 : index
    %1 = memref.load %arg1[%c1] : memref<2xf32, #tpu.memory_space<smem>>
    %c0_0 = arith.constant 0 : index
    %c0_1 = arith.constant 0 : index
    %c0_2 = arith.constant 0 : index
    %2 = vector.load %arg2[%c0_0, %c0_1, %c0_2] : memref<1x256x128xf32, #tpu.memory_space<vmem>>, vector<1x256x128xf32>
    %3 = vector.shape_cast %2 : vector<1x256x128xf32> to vector<256x128xf32>
    %c0_3 = arith.constant 0 : index
    %c0_4 = arith.constant 0 : index
    %4 = vector.load %arg3[%c0_3, %c0_4] : memref<128x128xf32, #tpu.memory_space<vmem>>, vector<128x128xf32>
    %cst = arith.constant dense<0.000000e+00> : vector<256x128xf32>
    %5 = tpu.matmul %3, %4, %cst {dimension_numbers = #tpu.dot_dimension_numbers<[1], [0], [0], [1], [0, 0, 1, 1], [], []>} : vector<256x128xf32>, vector<128x128xf32>, vector<256x128xf32> -> vector<256x128xf32>
    %c0_5 = arith.constant 0 : index
    %c0_6 = arith.constant 0 : index
    %6 = vector.load %arg4[%c0_5, %c0_6] : memref<1x128xf32, #tpu.memory_space<vmem>>, vector<1x128xf32>
    %7 = vector.broadcast %6 : vector<1x128xf32> to vector<256x128xf32>
    %8 = arith.addf %5, %7 : vector<256x128xf32>
    %cst_7 = arith.constant 0.000000e+00 : f32
    %9 = vector.broadcast %cst_7 : f32 to vector<256x128xf32>
    %10 = arith.cmpf oge, %8, %9 : vector<256x128xf32>
    %11 = vector.broadcast %0 : f32 to vector<256x128xf32>
    %12 = arith.mulf %11, %8 : vector<256x128xf32>
    %13 = arith.select %10, %8, %12 : vector<256x128xi1>, vector<256x128xf32>
    %cst_8 = arith.constant 0.000000e+00 : f32
    %14 = vector.broadcast %cst_8 : f32 to vector<1x32x128xf32>
    %c0_9 = arith.constant 0 : index
    %c0_10 = arith.constant 0 : index
    %c0_11 = arith.constant 0 : index
    %15 = vector.load %arg10[%c0_9, %c0_10, %c0_11] : memref<18x32x128xf32, #tpu.memory_space<vmem>>, vector<1x32x128xf32>
    tpu.vector_store %arg10[%c0_9, %c0_10, %c0_11], %14 {strides = array<i32>} : memref<18x32x128xf32, #tpu.memory_space<vmem>>, vector<1x32x128xf32>,
    %cst_12 = arith.constant 0.000000e+00 : f32
    %16 = vector.broadcast %cst_12 : f32 to vector<1x32x128xf32>
    %c17 = arith.constant 17 : index
    %c0_13 = arith.constant 0 : index
    %c0_14 = arith.constant 0 : index
    %17 = vector.load %arg10[%c17, %c0_13, %c0_14] : memref<18x32x128xf32, #tpu.memory_space<vmem>>, vector<1x32x128xf32>
    tpu.vector_store %arg10[%c17, %c0_13, %c0_14], %16 {strides = array<i32>} : memref<18x32x128xf32, #tpu.memory_space<vmem>>, vector<1x32x128xf32>,
    %cst_15 = arith.constant 0.000000e+00 : f32
    %18 = vector.broadcast %cst_15 : f32 to vector<18x8x128xf32>
    %c0_16 = arith.constant 0 : index
    %c0_17 = arith.constant 0 : index
    %c0_18 = arith.constant 0 : index
    %19 = vector.load %arg10[%c0_16, %c0_17, %c0_18] : memref<18x32x128xf32, #tpu.memory_space<vmem>>, vector<18x8x128xf32>
    tpu.vector_store %arg10[%c0_16, %c0_17, %c0_18], %18 {strides = array<i32>} : memref<18x32x128xf32, #tpu.memory_space<vmem>>, vector<18x8x128xf32>,
    %cst_19 = arith.constant 0.000000e+00 : f32
    %20 = vector.broadcast %cst_19 : f32 to vector<18x8x128xf32>
    %c0_20 = arith.constant 0 : index
    %c24 = arith.constant 24 : index
    %c0_21 = arith.constant 0 : index
    %21 = vector.load %arg10[%c0_20, %c24, %c0_21] : memref<18x32x128xf32, #tpu.memory_space<vmem>>, vector<18x8x128xf32>
    tpu.vector_store %arg10[%c0_20, %c24, %c0_21], %20 {strides = array<i32>} : memref<18x32x128xf32, #tpu.memory_space<vmem>>, vector<18x8x128xf32>,
    %22 = vector.shape_cast %13 : vector<256x128xf32> to vector<16x16x128xf32>
    %c1_22 = arith.constant 1 : index
    %c8 = arith.constant 8 : index
    %c0_23 = arith.constant 0 : index
    %23 = vector.load %arg10[%c1_22, %c8, %c0_23] : memref<18x32x128xf32, #tpu.memory_space<vmem>>, vector<16x16x128xf32>
    tpu.vector_store %arg10[%c1_22, %c8, %c0_23], %22 {strides = array<i32>} : memref<18x32x128xf32, #tpu.memory_space<vmem>>, vector<16x16x128xf32>,
    %c0_24 = arith.constant 0 : index
    %c0_25 = arith.constant 0 : index
    %24 = vector.load %arg5[%c0_24, %c0_25] : memref<9x128xf32, #tpu.memory_space<vmem>>, vector<9x128xf32>
    %c0_26 = arith.constant 0 : index
    %c7 = arith.constant 7 : index
    %c0_27 = arith.constant 0 : index
    %25 = vector.load %arg10[%c0_26, %c7, %c0_27] : memref<18x32x128xf32, #tpu.memory_space<vmem>>, vector<16x16x128xf32>
    %26 = vector.extract_strided_slice %24 {offsets = [0, 0], sizes = [1, 128], strides = [1, 1]} : vector<9x128xf32> to vector<1x128xf32>
    %27 = vector.shape_cast %26 : vector<1x128xf32> to vector<128xf32>
    %28 = vector.shape_cast %27 : vector<128xf32> to vector<1x1x128xf32>
    %29 = vector.broadcast %28 : vector<1x1x128xf32> to vector<16x16x128xf32>
    %30 = arith.mulf %25, %29 : vector<16x16x128xf32>
    %c0_28 = arith.constant 0 : index
    %c8_29 = arith.constant 8 : index
    %c0_30 = arith.constant 0 : index
    %31 = vector.load %arg10[%c0_28, %c8_29, %c0_30] : memref<18x32x128xf32, #tpu.memory_space<vmem>>, vector<16x16x128xf32>
    %32 = vector.extract_strided_slice %24 {offsets = [1, 0], sizes = [1, 128], strides = [1, 1]} : vector<9x128xf32> to vector<1x128xf32>
    %33 = vector.shape_cast %32 : vector<1x128xf32> to vector<128xf32>
    %34 = vector.shape_cast %33 : vector<128xf32> to vector<1x1x128xf32>
    %35 = vector.broadcast %34 : vector<1x1x128xf32> to vector<16x16x128xf32>
    %36 = arith.mulf %31, %35 : vector<16x16x128xf32>
    %37 = arith.addf %30, %36 : vector<16x16x128xf32>
    %c0_31 = arith.constant 0 : index
    %c9 = arith.constant 9 : index
    %c0_32 = arith.constant 0 : index
    %38 = vector.load %arg10[%c0_31, %c9, %c0_32] : memref<18x32x128xf32, #tpu.memory_space<vmem>>, vector<16x16x128xf32>
    %39 = vector.extract_strided_slice %24 {offsets = [2, 0], sizes = [1, 128], strides = [1, 1]} : vector<9x128xf32> to vector<1x128xf32>
    %40 = vector.shape_cast %39 : vector<1x128xf32> to vector<128xf32>
    %41 = vector.shape_cast %40 : vector<128xf32> to vector<1x1x128xf32>
    %42 = vector.broadcast %41 : vector<1x1x128xf32> to vector<16x16x128xf32>
    %43 = arith.mulf %38, %42 : vector<16x16x128xf32>
    %44 = arith.addf %37, %43 : vector<16x16x128xf32>
    %c1_33 = arith.constant 1 : index
    %c7_34 = arith.constant 7 : index
    %c0_35 = arith.constant 0 : index
    %45 = vector.load %arg10[%c1_33, %c7_34, %c0_35] : memref<18x32x128xf32, #tpu.memory_space<vmem>>, vector<16x16x128xf32>
    %46 = vector.extract_strided_slice %24 {offsets = [3, 0], sizes = [1, 128], strides = [1, 1]} : vector<9x128xf32> to vector<1x128xf32>
    %47 = vector.shape_cast %46 : vector<1x128xf32> to vector<128xf32>
    %48 = vector.shape_cast %47 : vector<128xf32> to vector<1x1x128xf32>
    %49 = vector.broadcast %48 : vector<1x1x128xf32> to vector<16x16x128xf32>
    %50 = arith.mulf %45, %49 : vector<16x16x128xf32>
    %51 = arith.addf %44, %50 : vector<16x16x128xf32>
    %c1_36 = arith.constant 1 : index
    %c8_37 = arith.constant 8 : index
    %c0_38 = arith.constant 0 : index
    %52 = vector.load %arg10[%c1_36, %c8_37, %c0_38] : memref<18x32x128xf32, #tpu.memory_space<vmem>>, vector<16x16x128xf32>
    %53 = vector.extract_strided_slice %24 {offsets = [4, 0], sizes = [1, 128], strides = [1, 1]} : vector<9x128xf32> to vector<1x128xf32>
    %54 = vector.shape_cast %53 : vector<1x128xf32> to vector<128xf32>
    %55 = vector.shape_cast %54 : vector<128xf32> to vector<1x1x128xf32>
    %56 = vector.broadcast %55 : vector<1x1x128xf32> to vector<16x16x128xf32>
    %57 = arith.mulf %52, %56 : vector<16x16x128xf32>
    %58 = arith.addf %51, %57 : vector<16x16x128xf32>
    %c1_39 = arith.constant 1 : index
    %c9_40 = arith.constant 9 : index
    %c0_41 = arith.constant 0 : index
    %59 = vector.load %arg10[%c1_39, %c9_40, %c0_41] : memref<18x32x128xf32, #tpu.memory_space<vmem>>, vector<16x16x128xf32>
    %60 = vector.extract_strided_slice %24 {offsets = [5, 0], sizes = [1, 128], strides = [1, 1]} : vector<9x128xf32> to vector<1x128xf32>
    %61 = vector.shape_cast %60 : vector<1x128xf32> to vector<128xf32>
    %62 = vector.shape_cast %61 : vector<128xf32> to vector<1x1x128xf32>
    %63 = vector.broadcast %62 : vector<1x1x128xf32> to vector<16x16x128xf32>
    %64 = arith.mulf %59, %63 : vector<16x16x128xf32>
    %65 = arith.addf %58, %64 : vector<16x16x128xf32>
    %c2 = arith.constant 2 : index
    %c7_42 = arith.constant 7 : index
    %c0_43 = arith.constant 0 : index
    %66 = vector.load %arg10[%c2, %c7_42, %c0_43] : memref<18x32x128xf32, #tpu.memory_space<vmem>>, vector<16x16x128xf32>
    %67 = vector.extract_strided_slice %24 {offsets = [6, 0], sizes = [1, 128], strides = [1, 1]} : vector<9x128xf32> to vector<1x128xf32>
    %68 = vector.shape_cast %67 : vector<1x128xf32> to vector<128xf32>
    %69 = vector.shape_cast %68 : vector<128xf32> to vector<1x1x128xf32>
    %70 = vector.broadcast %69 : vector<1x1x128xf32> to vector<16x16x128xf32>
    %71 = arith.mulf %66, %70 : vector<16x16x128xf32>
    %72 = arith.addf %65, %71 : vector<16x16x128xf32>
    %c2_44 = arith.constant 2 : index
    %c8_45 = arith.constant 8 : index
    %c0_46 = arith.constant 0 : index
    %73 = vector.load %arg10[%c2_44, %c8_45, %c0_46] : memref<18x32x128xf32, #tpu.memory_space<vmem>>, vector<16x16x128xf32>
    %74 = vector.extract_strided_slice %24 {offsets = [7, 0], sizes = [1, 128], strides = [1, 1]} : vector<9x128xf32> to vector<1x128xf32>
    %75 = vector.shape_cast %74 : vector<1x128xf32> to vector<128xf32>
    %76 = vector.shape_cast %75 : vector<128xf32> to vector<1x1x128xf32>
    %77 = vector.broadcast %76 : vector<1x1x128xf32> to vector<16x16x128xf32>
    %78 = arith.mulf %73, %77 : vector<16x16x128xf32>
    %79 = arith.addf %72, %78 : vector<16x16x128xf32>
    %c2_47 = arith.constant 2 : index
    %c9_48 = arith.constant 9 : index
    %c0_49 = arith.constant 0 : index
    %80 = vector.load %arg10[%c2_47, %c9_48, %c0_49] : memref<18x32x128xf32, #tpu.memory_space<vmem>>, vector<16x16x128xf32>
    %81 = vector.extract_strided_slice %24 {offsets = [8, 0], sizes = [1, 128], strides = [1, 1]} : vector<9x128xf32> to vector<1x128xf32>
    %82 = vector.shape_cast %81 : vector<1x128xf32> to vector<128xf32>
    %83 = vector.shape_cast %82 : vector<128xf32> to vector<1x1x128xf32>
    %84 = vector.broadcast %83 : vector<1x1x128xf32> to vector<16x16x128xf32>
    %85 = arith.mulf %80, %84 : vector<16x16x128xf32>
    %86 = arith.addf %79, %85 : vector<16x16x128xf32>
    %c0_50 = arith.constant 0 : index
    %c0_51 = arith.constant 0 : index
    %87 = vector.load %arg6[%c0_50, %c0_51] : memref<1x128xf32, #tpu.memory_space<vmem>>, vector<1x128xf32>
    %88 = vector.shape_cast %87 : vector<1x128xf32> to vector<1x1x128xf32>
    %89 = vector.broadcast %88 : vector<1x1x128xf32> to vector<16x16x128xf32>
    %90 = arith.addf %86, %89 : vector<16x16x128xf32>
    %cst_52 = arith.constant 0.000000e+00 : f32
    %91 = vector.broadcast %cst_52 : f32 to vector<16x16x128xf32>
    %92 = arith.cmpf oge, %90, %91 : vector<16x16x128xf32>
    %93 = vector.broadcast %1 : f32 to vector<16x16x128xf32>
    %94 = arith.mulf %93, %90 : vector<16x16x128xf32>
    %95 = arith.select %92, %90, %94 : vector<16x16x128xi1>, vector<16x16x128xf32>
    %96 = vector.shape_cast %95 : vector<16x16x128xf32> to vector<256x128xf32>
    %c0_53 = arith.constant 0 : index
    %c0_54 = arith.constant 0 : index
    %97 = vector.load %arg7[%c0_53, %c0_54] : memref<128x128xf32, #tpu.memory_space<vmem>>, vector<128x128xf32>
    %cst_55 = arith.constant dense<0.000000e+00> : vector<256x128xf32>
    %98 = tpu.matmul %96, %97, %cst_55 {dimension_numbers = #tpu.dot_dimension_numbers<[1], [0], [0], [1], [0, 0, 1, 1], [], []>} : vector<256x128xf32>, vector<128x128xf32>, vector<256x128xf32> -> vector<256x128xf32>
    %c0_56 = arith.constant 0 : index
    %c0_57 = arith.constant 0 : index
    %99 = vector.load %arg8[%c0_56, %c0_57] : memref<1x128xf32, #tpu.memory_space<vmem>>, vector<1x128xf32>
    %100 = vector.broadcast %99 : vector<1x128xf32> to vector<256x128xf32>
    %101 = arith.addf %98, %100 : vector<256x128xf32>
    %c0_58 = arith.constant 0 : index
    %c0_59 = arith.constant 0 : index
    %c0_60 = arith.constant 0 : index
    %102 = vector.load %arg9[%c0_58, %c0_59, %c0_60] : memref<1x256x128xf32, #tpu.memory_space<vmem>>, vector<1x256x128xf32>
    %103 = vector.shape_cast %102 : vector<1x256x128xf32> to vector<256x128xf32>
    %104 = vector.shape_cast %101 : vector<256x128xf32> to vector<1x256x128xf32>
    tpu.vector_store %arg9[%c0_58, %c0_59, %c0_60], %104 {strides = array<i32>} : memref<1x256x128xf32, #tpu.memory_space<vmem>>, vector<1x256x128xf32>,
    return
  }
  func.func @transform_0(%arg0: i32) -> i32 {
    %c0_i32 = arith.constant 0 : i32
    %c0_i32_0 = arith.constant 0 : i32
    return %c0_i32 : i32
  }
  func.func @transform_1(%arg0: i32) -> (i32, i32, i32) {
    %c0_i32 = arith.constant 0 : i32
    %c0_i32_0 = arith.constant 0 : i32
    %c0_i32_1 = arith.constant 0 : i32
    return %arg0, %c0_i32, %c0_i32_0 : i32, i32, i32
  }
  func.func @transform_2(%arg0: i32) -> (i32, i32) {
    %c0_i32 = arith.constant 0 : i32
    %c0_i32_0 = arith.constant 0 : i32
    %c0_i32_1 = arith.constant 0 : i32
    return %c0_i32, %c0_i32_0 : i32, i32
  }
  func.func @transform_3(%arg0: i32) -> (i32, i32) {
    %c0_i32 = arith.constant 0 : i32
    %c0_i32_0 = arith.constant 0 : i32
    %c0_i32_1 = arith.constant 0 : i32
    return %c0_i32, %c0_i32_0 : i32, i32
  }
  func.func @transform_4(%arg0: i32) -> (i32, i32) {
    %c0_i32 = arith.constant 0 : i32
    %c0_i32_0 = arith.constant 0 : i32
    %c0_i32_1 = arith.constant 0 : i32
    return %c0_i32, %c0_i32_0 : i32, i32
  }
  func.func @transform_5(%arg0: i32) -> (i32, i32) {
    %c0_i32 = arith.constant 0 : i32
    %c0_i32_0 = arith.constant 0 : i32
    %c0_i32_1 = arith.constant 0 : i32
    return %c0_i32, %c0_i32_0 : i32, i32
  }
  func.func @transform_6(%arg0: i32) -> (i32, i32) {
    %c0_i32 = arith.constant 0 : i32
    %c0_i32_0 = arith.constant 0 : i32
    %c0_i32_1 = arith.constant 0 : i32
    return %c0_i32, %c0_i32_0 : i32, i32
  }
  func.func @transform_7(%arg0: i32) -> (i32, i32) {
    %c0_i32 = arith.constant 0 : i32
    %c0_i32_0 = arith.constant 0 : i32
    %c0_i32_1 = arith.constant 0 : i32
    return %c0_i32, %c0_i32_0 : i32, i32
  }
  func.func @transform_8(%arg0: i32) -> (i32, i32, i32) {
    %c0_i32 = arith.constant 0 : i32
    %c0_i32_0 = arith.constant 0 : i32
    %c0_i32_1 = arith.constant 0 : i32
    return %arg0, %c0_i32, %c0_i32_0 : i32, i32, i32
  }
}

</mosaic_0001>

<llo_original>
// kernel: fused_bottleneck.1
$region0: #{fused_bottleneck.1}
  #allocation0 [shape = 'u32[]', space=smem, size = 0x4, offset = 0x4, fixed_abs, tag = 'smem constant byte address 0x4 - core index']
  #allocation1 [shape = 'u32[144,128]{1,0:T(1,128)}', space=vmem, size = 0x12000, scoped, tag = 'internal scratch']
  #allocation2 [shape = 'f32[18,32,128]{2,1,0:T(8,128)}', space=vmem, size = 0x48000, scoped, tag = 'scratch operand']
  %s0 = inlined_call_operand.vmem [shape: f32[2], index: 0, kind: input, shape index: {}]
  %s1 = inlined_call_operand.vmem [shape: f32[2,256,128], index: 1, kind: input, shape index: {}]
  %s2 = inlined_call_operand.vmem [shape: f32[128,128], index: 2, kind: input, shape index: {}]
  %s3 = inlined_call_operand.vmem [shape: f32[1,128], index: 3, kind: input, shape index: {}]
  %s4 = inlined_call_operand.vmem [shape: f32[9,128], index: 4, kind: input, shape index: {}]
  %s5 = inlined_call_operand.vmem [shape: f32[1,128], index: 5, kind: input, shape index: {}]
  %s6 = inlined_call_operand.vmem [shape: f32[128,128], index: 6, kind: input, shape index: {}]
  %s7 = inlined_call_operand.vmem [shape: f32[1,128], index: 7, kind: input, shape index: {}]
  %s8 = inlined_call_operand.hbm [shape: f32[2,256,128], index: 8, kind: output, shape index: {}]
  %s9 = sld [smem:[#allocation0]]
  $region69: #{fused_bottleneck.1} parent=0
    _
  %s11 = ssub.s32 1, %s9
  %s12 = scalar_select 0, %s11, %s9
  $region1: #{fused_bottleneck.1} parent=0
    #allocation3 [shape = 'u8[512]{0}', space=smem, size = 0x200, scoped, tag = 'input window, operand 0, single buffered']
    #allocation4 [shape = 's32[2]{0}', space=sflag, size = 0x8, scoped, tag = 'scoped memory for fused_bottleneck.1']
    #allocation5 [shape = 's32[2]{0}', space=sflag, size = 0x8, scoped, tag = 'scoped memory for fused_bottleneck.1']
    #allocation6 [shape = 'u8[262144]{0}', space=vmem, size = 0x40000, scoped, tag = 'output window, operand 0']
    %13 = vsyncpa [#allocation5], 0
    %14 = vsyncpa [#allocation4], 0
    %s15 = scalar_lea.sflag [#allocation4], 1
    %16 = vsyncpa %s15, 0
    loop: start=0, step=1, limit=4
    $region2: #{fused_bottleneck.1} parent=1 // loop_pre_header
      _
    $region3: #{fused_bottleneck.1} parent=1 // loop_header
      %s18 = sphi 0, %s22
      %p19 = scmp.ge.s32.totalorder %s18, 4
      %s26 = sphi 0, %s26
      %s28 = sphi 0, %s26
      %s29 = sphi 0, %s28
      %s43 = sphi 0, %s29
      %s49 = sphi 0, %s51
      %s52 = sphi 0, %s49
      %s53 = sphi 0, %s52
      %s69 = sphi 0, %s53
      %s73 = sphi 0, %s73
      %s75 = sphi 0, %s73
      %s76 = sphi 0, %s75
      %s90 = sphi 0, %s76
      %s94 = sphi 0, %s94
      %s96 = sphi 0, %s94
      %s97 = sphi 0, %s96
      %s111 = sphi 0, %s97
      %s115 = sphi 0, %s115
      %s117 = sphi 0, %s115
      %s118 = sphi 0, %s117
      %s132 = sphi 0, %s118
      %s136 = sphi 0, %s136
      %s138 = sphi 0, %s136
      %s139 = sphi 0, %s138
      %s153 = sphi 0, %s139
      %s157 = sphi 0, %s157
      %s159 = sphi 0, %s157
      %s160 = sphi 0, %s159
      %s174 = sphi 0, %s160
      %s178 = sphi 0, %s178
      %s180 = sphi 0, %s178
      %s181 = sphi 0, %s180
      %s195 = sphi 0, %s181
      %s201 = sphi 0, %s203
      %s204 = sphi 0, %s201
      %s205 = sphi 0, %s204
      %s221 = sphi 0, %s205
    $region4: #{fused_bottleneck.1} parent=1 // loop_header_branch
      %21 = sbr.rel (%p19) target = $region8
    $region5: #{fused_bottleneck.1} parent=1 // loop_body
      %s23 = ssub.s32 %s18, 1
      %s24 = ssub.s32 %s18, 2
      %s25 = sadd.s32 %s18, 1
      %s27 = sadd.s32 %s26, 1
      %p30 = scmp.eq.s32.totalorder %s18, 1
      %p31 = scmp.ne.s32.totalorder %s26, %s28
      %p32 = scmp.eq.s32.totalorder %s18, 0
      %p33 = por %p31, %p32
      %p34 = scmp.ne.s32.totalorder %s26, %s28
      %p35 = scmp.eq.s32.totalorder %s23, 1
      %p36 = por %p34, %p35
      %p37 = scmp.ne.s32.totalorder %s28, %s29
      %p38 = scmp.eq.s32.totalorder %s23, 0
      %p39 = por %p37, %p38
      %p40 = scmp.ne.s32.totalorder %s28, %s29
      %p41 = scmp.eq.s32.totalorder %s24, 1
      %p42 = por %p40, %p41
      %p44 = scmp.ne.s32.totalorder %s29, %s43
      %p45 = scmp.eq.s32.totalorder %s24, 0
      %p46 = por %p44, %p45
      %s47 = ssub.s32 %s18, %s25
      %p48 = scmp.eq.s32.totalorder %s47, 0
      %s50 = sadd.s32 %s49, 1
      %s51 = scalar_select %p48, %s49, %s50
      %p54 = pneg %p48
      %p55 = scmp.eq.s32.totalorder %s18, 1
      %p56 = por %p54, %p55
      %p57 = scmp.ne.s32.totalorder %s49, %s52
      %p58 = scmp.eq.s32.totalorder %s18, 0
      %p59 = por %p57, %p58
      %p60 = scmp.ne.s32.totalorder %s49, %s52
      %p61 = scmp.eq.s32.totalorder %s23, 1
      %p62 = por %p60, %p61
      %p63 = scmp.ne.s32.totalorder %s52, %s53
      %p64 = scmp.eq.s32.totalorder %s23, 0
      %p65 = por %p63, %p64
      %p66 = scmp.ne.s32.totalorder %s52, %s53
      %p67 = scmp.eq.s32.totalorder %s24, 1
      %p68 = por %p66, %p67
      %p70 = scmp.ne.s32.totalorder %s53, %s69
      %p71 = scmp.eq.s32.totalorder %s24, 0
      %p72 = por %p70, %p71
      %s74 = sadd.s32 %s73, 1
      %p77 = scmp.eq.s32.totalorder %s18, 1
      %p78 = scmp.ne.s32.totalorder %s73, %s75
      %p79 = scmp.eq.s32.totalorder %s18, 0
      %p80 = por %p78, %p79
      %p81 = scmp.ne.s32.totalorder %s73, %s75
      %p82 = scmp.eq.s32.totalorder %s23, 1
      %p83 = por %p81, %p82
      %p84 = scmp.ne.s32.totalorder %s75, %s76
      %p85 = scmp.eq.s32.totalorder %s23, 0
      %p86 = por %p84, %p85
      %p87 = scmp.ne.s32.totalorder %s75, %s76
      %p88 = scmp.eq.s32.totalorder %s24, 1
      %p89 = por %p87, %p88
      %p91 = scmp.ne.s32.totalorder %s76, %s90
      %p92 = scmp.eq.s32.totalorder %s24, 0
      %p93 = por %p91, %p92
      %s95 = sadd.s32 %s94, 1
      %p98 = scmp.eq.s32.totalorder %s18, 1
      %p99 = scmp.ne.s32.totalorder %s94, %s96
      %p100 = scmp.eq.s32.totalorder %s18, 0
      %p101 = por %p99, %p100
      %p102 = scmp.ne.s32.totalorder %s94, %s96
      %p103 = scmp.eq.s32.totalorder %s23, 1
      %p104 = por %p102, %p103
      %p105 = scmp.ne.s32.totalorder %s96, %s97
      %p106 = scmp.eq.s32.totalorder %s23, 0
      %p107 = por %p105, %p106
      %p108 = scmp.ne.s32.totalorder %s96, %s97
      %p109 = scmp.eq.s32.totalorder %s24, 1
      %p110 = por %p108, %p109
      %p112 = scmp.ne.s32.totalorder %s97, %s111
      %p113 = scmp.eq.s32.totalorder %s24, 0
      %p114 = por %p112, %p113
      %s116 = sadd.s32 %s115, 1
      %p119 = scmp.eq.s32.totalorder %s18, 1
      %p120 = scmp.ne.s32.totalorder %s115, %s117
      %p121 = scmp.eq.s32.totalorder %s18, 0
      %p122 = por %p120, %p121
      %p123 = scmp.ne.s32.totalorder %s115, %s117
      %p124 = scmp.eq.s32.totalorder %s23, 1
      %p125 = por %p123, %p124
      %p126 = scmp.ne.s32.totalorder %s117, %s118
      %p127 = scmp.eq.s32.totalorder %s23, 0
      %p128 = por %p126, %p127
      %p129 = scmp.ne.s32.totalorder %s117, %s118
      %p130 = scmp.eq.s32.totalorder %s24, 1
      %p131 = por %p129, %p130
      %p133 = scmp.ne.s32.totalorder %s118, %s132
      %p134 = scmp.eq.s32.totalorder %s24, 0
      %p135 = por %p133, %p134
      %s137 = sadd.s32 %s136, 1
      %p140 = scmp.eq.s32.totalorder %s18, 1
      %p141 = scmp.ne.s32.totalorder %s136, %s138
      %p142 = scmp.eq.s32.totalorder %s18, 0
      %p143 = por %p141, %p142
      %p144 = scmp.ne.s32.totalorder %s136, %s138
      %p145 = scmp.eq.s32.totalorder %s23, 1
      %p146 = por %p144, %p145
      %p147 = scmp.ne.s32.totalorder %s138, %s139
      %p148 = scmp.eq.s32.totalorder %s23, 0
      %p149 = por %p147, %p148
      %p150 = scmp.ne.s32.totalorder %s138, %s139
      %p151 = scmp.eq.s32.totalorder %s24, 1
      %p152 = por %p150, %p151
      %p154 = scmp.ne.s32.totalorder %s139, %s153
      %p155 = scmp.eq.s32.totalorder %s24, 0
      %p156 = por %p154, %p155
      %s158 = sadd.s32 %s157, 1
      %p161 = scmp.eq.s32.totalorder %s18, 1
      %p162 = scmp.ne.s32.totalorder %s157, %s159
      %p163 = scmp.eq.s32.totalorder %s18, 0
      %p164 = por %p162, %p163
      %p165 = scmp.ne.s32.totalorder %s157, %s159
      %p166 = scmp.eq.s32.totalorder %s23, 1
      %p167 = por %p165, %p166
      %p168 = scmp.ne.s32.totalorder %s159, %s160
      %p169 = scmp.eq.s32.totalorder %s23, 0
      %p170 = por %p168, %p169
      %p171 = scmp.ne.s32.totalorder %s159, %s160
      %p172 = scmp.eq.s32.totalorder %s24, 1
      %p173 = por %p171, %p172
      %p175 = scmp.ne.s32.totalorder %s160, %s174
      %p176 = scmp.eq.s32.totalorder %s24, 0
      %p177 = por %p175, %p176
      %s179 = sadd.s32 %s178, 1
      %p182 = scmp.eq.s32.totalorder %s18, 1
      %p183 = scmp.ne.s32.totalorder %s178, %s180
      %p184 = scmp.eq.s32.totalorder %s18, 0
      %p185 = por %p183, %p184
      %p186 = scmp.ne.s32.totalorder %s178, %s180
      %p187 = scmp.eq.s32.totalorder %s23, 1
      %p188 = por %p186, %p187
      %p189 = scmp.ne.s32.totalorder %s180, %s181
      %p190 = scmp.eq.s32.totalorder %s23, 0
      %p191 = por %p189, %p190
      %p192 = scmp.ne.s32.totalorder %s180, %s181
      %p193 = scmp.eq.s32.totalorder %s24, 1
      %p194 = por %p192, %p193
      %p196 = scmp.ne.s32.totalorder %s181, %s195
      %p197 = scmp.eq.s32.totalorder %s24, 0
      %p198 = por %p196, %p197
      %s199 = ssub.s32 %s18, %s25
      %p200 = scmp.eq.s32.totalorder %s199, 0
      %s202 = sadd.s32 %s201, 1
      %s203 = scalar_select %p200, %s201, %s202
      %p206 = pneg %p200
      %p207 = scmp.eq.s32.totalorder %s18, 1
      %p208 = por %p206, %p207
      %p209 = scmp.ne.s32.totalorder %s201, %s204
      %p210 = scmp.eq.s32.totalorder %s18, 0
      %p211 = por %p209, %p210
      %p212 = scmp.ne.s32.totalorder %s201, %s204
      %p213 = scmp.eq.s32.totalorder %s23, 1
      %p214 = por %p212, %p213
      %p215 = scmp.ne.s32.totalorder %s204, %s205
      %p216 = scmp.eq.s32.totalorder %s23, 0
      %p217 = por %p215, %p216
      %p218 = scmp.ne.s32.totalorder %s204, %s205
      %p219 = scmp.eq.s32.totalorder %s24, 1
      %p220 = por %p218, %p219
      %p222 = scmp.ne.s32.totalorder %s205, %s221
      %p223 = scmp.eq.s32.totalorder %s24, 0
      %p224 = por %p222, %p223
      %p225 = scmp.le.s32.totalorder 1, %s18
      %p226 = scmp.lt.s32.totalorder %s18, 3
      %p227 = pnand %p225, %p226
      %p228 = pneg %p227
      // Predicated region
      $region9: #{fused_bottleneck.1} parent=5 // pred_check
        _
      $region10: #{fused_bottleneck.1} parent=5 // pred_check_branch
        %230 = sbr.rel (%p227) target = $region12
      $region11: #{fused_bottleneck.1} parent=5 // pred_region
        %s231 = ssub.s32 %s18, 1
        // Predicated region
        $region13: #{fused_bottleneck.1} parent=11 // pred_check
          %p232 = pneg %p39
        $region14: #{fused_bottleneck.1} parent=11 // pred_check_branch
          %234 = sbr.rel (%p232) target = $region16
        $region15: #{fused_bottleneck.1} parent=11 // pred_region
          %s236 = ssub.s32 16, 16
          %237 = vsyncadd [#allocation5], %s236
          %s239 = sshll.u32 %s0, 4
          %s240 = int_to_ptr.vmem [resolvable:$true] %s239
          %242 = dma.vmem_to_smem %s240, 16, [#allocation3], [#allocation5]
        $region16: #{fused_bottleneck.1} parent=11 // pred_fallthru
          _
        // Predicated region
        $region17: #{fused_bottleneck.1} parent=11 // pred_check
          %p243 = pneg %p86
        $region18: #{fused_bottleneck.1} parent=11 // pred_check_branch
          %245 = sbr.rel (%p243) target = $region20
        $region19: #{fused_bottleneck.1} parent=11 // pred_region
          _
        $region20: #{fused_bottleneck.1} parent=11 // pred_fallthru
          _
        // Predicated region
        $region21: #{fused_bottleneck.1} parent=11 // pred_check
          %p246 = pneg %p107
        $region22: #{fused_bottleneck.1} parent=11 // pred_check_branch
          %248 = sbr.rel (%p246) target = $region24
        $region23: #{fused_bottleneck.1} parent=11 // pred_region
          _
        $region24: #{fused_bottleneck.1} parent=11 // pred_fallthru
          _
        // Predicated region
        $region25: #{fused_bottleneck.1} parent=11 // pred_check
          %p249 = pneg %p128
        $region26: #{fused_bottleneck.1} parent=11 // pred_check_branch
          %251 = sbr.rel (%p249) target = $region28
        $region27: #{fused_bottleneck.1} parent=11 // pred_region
          _
        $region28: #{fused_bottleneck.1} parent=11 // pred_fallthru
          _
        // Predicated region
        $region29: #{fused_bottleneck.1} parent=11 // pred_check
          %p252 = pneg %p149
        $region30: #{fused_bottleneck.1} parent=11 // pred_check_branch
          %254 = sbr.rel (%p252) target = $region32
        $region31: #{fused_bottleneck.1} parent=11 // pred_region
          _
        $region32: #{fused_bottleneck.1} parent=11 // pred_fallthru
          _
        // Predicated region
        $region33: #{fused_bottleneck.1} parent=11 // pred_check
          %p255 = pneg %p170
        $region34: #{fused_bottleneck.1} parent=11 // pred_check_branch
          %257 = sbr.rel (%p255) target = $region36
        $region35: #{fused_bottleneck.1} parent=11 // pred_region
          _
        $region36: #{fused_bottleneck.1} parent=11 // pred_fallthru
          _
        // Predicated region
        $region37: #{fused_bottleneck.1} parent=11 // pred_check
          %p258 = pneg %p191
        $region38: #{fused_bottleneck.1} parent=11 // pred_check_branch
          %260 = sbr.rel (%p258) target = $region40
        $region39: #{fused_bottleneck.1} parent=11 // pred_region
          _
        $region40: #{fused_bottleneck.1} parent=11 // pred_fallthru
          _
      $region12: #{fused_bottleneck.1} parent=5 // pred_fallthru
        _
      %p261 = scmp.lt.s32.totalorder %s18, 2
      // Predicated region
      $region41: #{fused_bottleneck.1} parent=5 // pred_check
        %p262 = pneg %p261
      $region42: #{fused_bottleneck.1} parent=5 // pred_check_branch
        %264 = sbr.rel (%p262) target = $region44
      $region43: #{fused_bottleneck.1} parent=5 // pred_region
        // Predicated region
        $region45: #{fused_bottleneck.1} parent=43 // pred_check
          %p265 = pneg %p59
        $region46: #{fused_bottleneck.1} parent=43 // pred_check_branch
          %267 = sbr.rel (%p265) target = $region48
        $region47: #{fused_bottleneck.1} parent=43 // pred_region
          %p268 = scmp.lt.s32.totalorder %s18, 1
          %s269 = scalar_select %p268, %s18, 1
          %s270 = smul.addr %s269, 32
          %s271 = smul.addr %s270, 8
          %s272 = scalar_lea.vmem %s1, %s271
        $region48: #{fused_bottleneck.1} parent=43 // pred_fallthru
          _
      $region44: #{fused_bottleneck.1} parent=5 // pred_fallthru
        _
      %p273 = scmp.le.s32.totalorder 1, %s18
      %p274 = scmp.lt.s32.totalorder %s18, 3
      %p275 = pnand %p273, %p274
      %p276 = pneg %p275
      // Predicated region
      $region49: #{fused_bottleneck.1} parent=5 // pred_check
        _
      $region50: #{fused_bottleneck.1} parent=5 // pred_check_branch
        %278 = sbr.rel (%p275) target = $region52
      $region51: #{fused_bottleneck.1} parent=5 // pred_region
        %s279 = ssub.s32 %s18, 1
        // Predicated region
        $region53: #{fused_bottleneck.1} parent=51 // pred_check
          %p280 = pneg %p39
        $region54: #{fused_bottleneck.1} parent=51 // pred_check_branch
          %282 = sbr.rel (%p280) target = $region56
        $region55: #{fused_bottleneck.1} parent=51 // pred_region
          %283 = dma.done [#allocation5], 16
        $region56: #{fused_bottleneck.1} parent=51 // pred_fallthru
          _
        %284 = sfence
        %p285 = pneg %p39
        %p286 = pneg %p36
        %p287 = scmp.lt.s32.totalorder %s23, 1
        %s288 = scalar_select %p287, %s23, 1
        %s289 = smul.addr %s288, 32
        %s290 = smul.addr %s289, 8
        %s291 = scalar_lea.vmem %s1, %s290
        %p292 = pneg %p65
        %p293 = pneg %p62
        %p294 = pneg %p86
        %p295 = pneg %p83
        %p296 = pneg %p107
        %p297 = pneg %p104
        %p298 = pneg %p128
        %p299 = pneg %p125
        %p300 = pneg %p149
        %p301 = pneg %p146
        %p302 = pneg %p170
        %p303 = pneg %p167
        %p304 = pneg %p191
        %p305 = pneg %p188
        %p306 = pneg %p217
        %p307 = pneg %p214
        %s308 = sand.u32 %s204, 1
        %s309 = scalar_lea.sflag [#allocation4], %s308
        %s310 = sand.u32 %s204, 1
        %s311 = smul.addr %s310, 256
        %s312 = scalar_lea.vmem [#allocation6], %s311
        %p313 = scmp.lt.s32.totalorder %s23, 1
        %s314 = scalar_select %p313, %s23, 1
        %s315 = smul.addr %s314, 32
        %s316 = smul.addr %s315, 8
        %s317 = scalar_lea.vmem %s1, %s316
        %s318 = sld [smem:[#allocation3]]
        %s319 = sld [smem:[#allocation3 + $0x1]]
        %v320 = vld [vmem:[%s317] sm:$0xff]
        %v321 = vld [vmem:[%s317 + $0x8] sm:$0xff]
        %v322 = vld [vmem:[%s317 + $0x10] sm:$0xff]
        %v323 = vld [vmem:[%s317 + $0x18] sm:$0xff]
        %v324 = vld [vmem:[%s317 + $0x20] sm:$0xff]
        %v325 = vld [vmem:[%s317 + $0x28] sm:$0xff]
        %v326 = vld [vmem:[%s317 + $0x30] sm:$0xff]
        %v327 = vld [vmem:[%s317 + $0x38] sm:$0xff]
        %v328 = vld [vmem:[%s317 + $0x40] sm:$0xff]
        %v329 = vld [vmem:[%s317 + $0x48] sm:$0xff]
        %v330 = vld [vmem:[%s317 + $0x50] sm:$0xff]
        %v331 = vld [vmem:[%s317 + $0x58] sm:$0xff]
        %v332 = vld [vmem:[%s317 + $0x60] sm:$0xff]
        %v333 = vld [vmem:[%s317 + $0x68] sm:$0xff]
        %v334 = vld [vmem:[%s317 + $0x70] sm:$0xff]
        %v335 = vld [vmem:[%s317 + $0x78] sm:$0xff]
        %v336 = vld [vmem:[%s317 + $0x80] sm:$0xff]
        %v337 = vld [vmem:[%s317 + $0x88] sm:$0xff]
        %v338 = vld [vmem:[%s317 + $0x90] sm:$0xff]
        %v339 = vld [vmem:[%s317 + $0x98] sm:$0xff]
        %v340 = vld [vmem:[%s317 + $0xa0] sm:$0xff]
        %v341 = vld [vmem:[%s317 + $0xa8] sm:$0xff]
        %v342 = vld [vmem:[%s317 + $0xb0] sm:$0xff]
        %v343 = vld [vmem:[%s317 + $0xb8] sm:$0xff]
        %v344 = vld [vmem:[%s317 + $0xc0] sm:$0xff]
        %v345 = vld [vmem:[%s317 + $0xc8] sm:$0xff]
        %v346 = vld [vmem:[%s317 + $0xd0] sm:$0xff]
        %v347 = vld [vmem:[%s317 + $0xd8] sm:$0xff]
        %v348 = vld [vmem:[%s317 + $0xe0] sm:$0xff]
        %v349 = vld [vmem:[%s317 + $0xe8] sm:$0xff]
        %v350 = vld [vmem:[%s317 + $0xf0] sm:$0xff]
        %v351 = vld [vmem:[%s317 + $0xf8] sm:$0xff]
        %v352 = vld [vmem:[%s2] sm:$0xff]
        %v353 = vld [vmem:[%s2 + $0x8] sm:$0xff]
        %v354 = vld [vmem:[%s2 + $0x10] sm:$0xff]
        %v355 = vld [vmem:[%s2 + $0x18] sm:$0xff]
        %v356 = vld [vmem:[%s2 + $0x20] sm:$0xff]
        %v357 = vld [vmem:[%s2 + $0x28] sm:$0xff]
        %v358 = vld [vmem:[%s2 + $0x30] sm:$0xff]
        %v359 = vld [vmem:[%s2 + $0x38] sm:$0xff]
        %v360 = vld [vmem:[%s2 + $0x40] sm:$0xff]
        %v361 = vld [vmem:[%s2 + $0x48] sm:$0xff]
        %v362 = vld [vmem:[%s2 + $0x50] sm:$0xff]
        %v363 = vld [vmem:[%s2 + $0x58] sm:$0xff]
        %v364 = vld [vmem:[%s2 + $0x60] sm:$0xff]
        %v365 = vld [vmem:[%s2 + $0x68] sm:$0xff]
        %v366 = vld [vmem:[%s2 + $0x70] sm:$0xff]
        %v367 = vld [vmem:[%s2 + $0x78] sm:$0xff]
        %v368 = vld [vmem:[%s3] sm:$0x1]
        %v370 = vlaneseq
        %v371 = vshrl.u32 %v370, 7
        %v372 = vsub.s32 0, %v371
        %v373 = vrot.slane %v368, %v372
        %375 = vmatprep.subr.mxu0 0.0
        %376 = vmatpush1.msra.mxu0 %v367
        %377 = vmatprep.subr.mxu0 0.0
        %378 = vmatpush1.msra.mxu0 %v366
        %379 = vmatprep.subr.mxu0 0.0
        %380 = vmatpush1.msra.mxu0 %v365
        %381 = vmatprep.subr.mxu0 0.0
        %382 = vmatpush1.msra.mxu0 %v364
        %383 = vmatprep.subr.mxu0 0.0
        %384 = vmatpush1.msra.mxu0 %v363
        %385 = vmatprep.subr.mxu0 0.0
        %386 = vmatpush1.msra.mxu0 %v362
        %387 = vmatprep.subr.mxu0 0.0
        %388 = vmatpush1.msra.mxu0 %v361
        %389 = vmatprep.subr.mxu0 0.0
        %390 = vmatpush1.msra.mxu0 %v360
        %391 = vmatprep.subr.mxu0 0.0
        %392 = vmatpush1.msra.mxu0 %v359
        %393 = vmatprep.subr.mxu0 0.0
        %394 = vmatpush1.msra.mxu0 %v358
        %395 = vmatprep.subr.mxu0 0.0
        %396 = vmatpush1.msra.mxu0 %v357
        %397 = vmatprep.subr.mxu0 0.0
        %398 = vmatpush1.msra.mxu0 %v356
        %399 = vmatprep.subr.mxu0 0.0
        %400 = vmatpush1.msra.mxu0 %v355
        %401 = vmatprep.subr.mxu0 0.0
        %402 = vmatpush1.msra.mxu0 %v354
        %403 = vmatprep.subr.mxu0 0.0
        %404 = vmatpush1.msra.mxu0 %v353
        %405 = vmatprep.subr.mxu0 0.0
        %406 = vmatpush1.msra.mxu0 %v352
        %407 = vmatprep.subr.mxu0 0.0
        %408 = vmatpush2.msra.mxu0 0.0
        %409 = vmatprep.subr.mxu0 0.0
        %410 = vmatpush2.msra.mxu0 0.0
        %411 = vmatprep.subr.mxu0 0.0
        %412 = vmatpush2.msra.mxu0 0.0
        %413 = vmatprep.subr.mxu0 0.0
        %414 = vmatpush2.msra.mxu0 0.0
        %415 = vmatprep.subr.mxu0 0.0
        %416 = vmatpush2.msra.mxu0 0.0
        %417 = vmatprep.subr.mxu0 0.0
        %418 = vmatpush2.msra.mxu0 0.0
        %419 = vmatprep.subr.mxu0 0.0
        %420 = vmatpush2.msra.mxu0 0.0
        %421 = vmatprep.subr.mxu0 0.0
        %422 = vmatpush2.msra.mxu0 0.0
        %423 = vmatprep.subr.mxu0 0.0
        %424 = vmatpush2.msra.mxu0 0.0
        %425 = vmatprep.subr.mxu0 0.0
        %426 = vmatpush2.msra.mxu0 0.0
        %427 = vmatprep.subr.mxu0 0.0
        %428 = vmatpush2.msra.mxu0 0.0
        %429 = vmatprep.subr.mxu0 0.0
        %430 = vmatpush2.msra.mxu0 0.0
        %431 = vmatprep.subr.mxu0 0.0
        %432 = vmatpush2.msra.mxu0 0.0
        %433 = vmatprep.subr.mxu0 0.0
        %434 = vmatpush2.msra.mxu0 0.0
        %435 = vmatprep.subr.mxu0 0.0
        %436 = vmatpush2.msra.mxu0 0.0
        %437 = vmatprep.subr.mxu0 0.0
        %438 = vmatpush2.msra.mxu0 0.0
        %439 = vmatprep.mubr.f32.mxu0 0.0
        %440 = vmatmul.mubr.f32.gmra.mxu0 %v320
        %v441 = vpop.f32.mrf.mxu0
        %v442 = vadd.f32 %v373, %v441
        %v443 = vpop.f32.mrf.mxu0
        %444 = vmatprep.mubr.f32.mxu0 0.0
        %445 = vmatmul.mubr.f32.gmra.mxu0 %v321
        %v446 = vpop.f32.mrf.mxu0
        %v447 = vadd.f32 %v373, %v446
        %v448 = vpop.f32.mrf.mxu0
        %449 = vmatprep.mubr.f32.mxu0 0.0
        %450 = vmatmul.mubr.f32.gmra.mxu0 %v322
        %v451 = vpop.f32.mrf.mxu0
        %v452 = vadd.f32 %v373, %v451
        %v453 = vpop.f32.mrf.mxu0
        %454 = vmatprep.mubr.f32.mxu0 0.0
        %455 = vmatmul.mubr.f32.gmra.mxu0 %v323
        %v456 = vpop.f32.mrf.mxu0
        %v457 = vadd.f32 %v373, %v456
        %v458 = vpop.f32.mrf.mxu0
        %459 = vmatprep.mubr.f32.mxu0 0.0
        %460 = vmatmul.mubr.f32.gmra.mxu0 %v324
        %v461 = vpop.f32.mrf.mxu0
        %v462 = vadd.f32 %v373, %v461
        %v463 = vpop.f32.mrf.mxu0
        %464 = vmatprep.mubr.f32.mxu0 0.0
        %465 = vmatmul.mubr.f32.gmra.mxu0 %v325
        %v466 = vpop.f32.mrf.mxu0
        %v467 = vadd.f32 %v373, %v466
        %v468 = vpop.f32.mrf.mxu0
        %469 = vmatprep.mubr.f32.mxu0 0.0
        %470 = vmatmul.mubr.f32.gmra.mxu0 %v326
        %v471 = vpop.f32.mrf.mxu0
        %v472 = vadd.f32 %v373, %v471
        %v473 = vpop.f32.mrf.mxu0
        %474 = vmatprep.mubr.f32.mxu0 0.0
        %475 = vmatmul.mubr.f32.gmra.mxu0 %v327
        %v476 = vpop.f32.mrf.mxu0
        %v477 = vadd.f32 %v373, %v476
        %v478 = vpop.f32.mrf.mxu0
        %479 = vmatprep.mubr.f32.mxu0 0.0
        %480 = vmatmul.mubr.f32.gmra.mxu0 %v328
        %v481 = vpop.f32.mrf.mxu0
        %v482 = vadd.f32 %v373, %v481
        %v483 = vpop.f32.mrf.mxu0
        %484 = vmatprep.mubr.f32.mxu0 0.0
        %485 = vmatmul.mubr.f32.gmra.mxu0 %v329
        %v486 = vpop.f32.mrf.mxu0
        %v487 = vadd.f32 %v373, %v486
        %v488 = vpop.f32.mrf.mxu0
        %489 = vmatprep.mubr.f32.mxu0 0.0
        %490 = vmatmul.mubr.f32.gmra.mxu0 %v330
        %v491 = vpop.f32.mrf.mxu0
        %v492 = vadd.f32 %v373, %v491
        %v493 = vpop.f32.mrf.mxu0
        %494 = vmatprep.mubr.f32.mxu0 0.0
        %495 = vmatmul.mubr.f32.gmra.mxu0 %v331
        %v496 = vpop.f32.mrf.mxu0
        %v497 = vadd.f32 %v373, %v496
        %v498 = vpop.f32.mrf.mxu0
        %499 = vmatprep.mubr.f32.mxu0 0.0
        %500 = vmatmul.mubr.f32.gmra.mxu0 %v332
        %v501 = vpop.f32.mrf.mxu0
        %v502 = vadd.f32 %v373, %v501
        %v503 = vpop.f32.mrf.mxu0
        %504 = vmatprep.mubr.f32.mxu0 0.0
        %505 = vmatmul.mubr.f32.gmra.mxu0 %v333
        %v506 = vpop.f32.mrf.mxu0
        %v507 = vadd.f32 %v373, %v506
        %v508 = vpop.f32.mrf.mxu0
        %509 = vmatprep.mubr.f32.mxu0 0.0
        %510 = vmatmul.mubr.f32.gmra.mxu0 %v334
        %v511 = vpop.f32.mrf.mxu0
        %v512 = vadd.f32 %v373, %v511
        %v513 = vpop.f32.mrf.mxu0
        %514 = vmatprep.mubr.f32.mxu0 0.0
        %515 = vmatmul.mubr.f32.gmra.mxu0 %v335
        %v516 = vpop.f32.mrf.mxu0
        %v517 = vadd.f32 %v373, %v516
        %v518 = vpop.f32.mrf.mxu0
        %519 = vmatprep.mubr.f32.mxu0 0.0
        %520 = vmatmul.mubr.f32.gmra.mxu0 %v336
        %v521 = vpop.f32.mrf.mxu0
        %v522 = vadd.f32 %v373, %v521
        %v523 = vpop.f32.mrf.mxu0
        %524 = vmatprep.mubr.f32.mxu0 0.0
        %525 = vmatmul.mubr.f32.gmra.mxu0 %v337
        %v526 = vpop.f32.mrf.mxu0
        %v527 = vadd.f32 %v373, %v526
        %v528 = vpop.f32.mrf.mxu0
        %529 = vmatprep.mubr.f32.mxu0 0.0
        %530 = vmatmul.mubr.f32.gmra.mxu0 %v338
        %v531 = vpop.f32.mrf.mxu0
        %v532 = vadd.f32 %v373, %v531
        %v533 = vpop.f32.mrf.mxu0
        %534 = vmatprep.mubr.f32.mxu0 0.0
        %535 = vmatmul.mubr.f32.gmra.mxu0 %v339
        %v536 = vpop.f32.mrf.mxu0
        %v537 = vadd.f32 %v373, %v536
        %v538 = vpop.f32.mrf.mxu0
        %539 = vmatprep.mubr.f32.mxu0 0.0
        %540 = vmatmul.mubr.f32.gmra.mxu0 %v340
        %v541 = vpop.f32.mrf.mxu0
        %v542 = vadd.f32 %v373, %v541
        %v543 = vpop.f32.mrf.mxu0
        %544 = vmatprep.mubr.f32.mxu0 0.0
        %545 = vmatmul.mubr.f32.gmra.mxu0 %v341
        %v546 = vpop.f32.mrf.mxu0
        %v547 = vadd.f32 %v373, %v546
        %v548 = vpop.f32.mrf.mxu0
        %549 = vmatprep.mubr.f32.mxu0 0.0
        %550 = vmatmul.mubr.f32.gmra.mxu0 %v342
        %v551 = vpop.f32.mrf.mxu0
        %v552 = vadd.f32 %v373, %v551
        %v553 = vpop.f32.mrf.mxu0
        %554 = vmatprep.mubr.f32.mxu0 0.0
        %555 = vmatmul.mubr.f32.gmra.mxu0 %v343
        %v556 = vpop.f32.mrf.mxu0
        %v557 = vadd.f32 %v373, %v556
        %v558 = vpop.f32.mrf.mxu0
        %559 = vmatprep.mubr.f32.mxu0 0.0
        %560 = vmatmul.mubr.f32.gmra.mxu0 %v344
        %v561 = vpop.f32.mrf.mxu0
        %v562 = vadd.f32 %v373, %v561
        %v563 = vpop.f32.mrf.mxu0
        %564 = vmatprep.mubr.f32.mxu0 0.0
        %565 = vmatmul.mubr.f32.gmra.mxu0 %v345
        %v566 = vpop.f32.mrf.mxu0
        %v567 = vadd.f32 %v373, %v566
        %v568 = vpop.f32.mrf.mxu0
        %569 = vmatprep.mubr.f32.mxu0 0.0
        %570 = vmatmul.mubr.f32.gmra.mxu0 %v346
        %v571 = vpop.f32.mrf.mxu0
        %v572 = vadd.f32 %v373, %v571
        %v573 = vpop.f32.mrf.mxu0
        %574 = vmatprep.mubr.f32.mxu0 0.0
        %575 = vmatmul.mubr.f32.gmra.mxu0 %v347
        %v576 = vpop.f32.mrf.mxu0
        %v577 = vadd.f32 %v373, %v576
        %v578 = vpop.f32.mrf.mxu0
        %579 = vmatprep.mubr.f32.mxu0 0.0
        %580 = vmatmul.mubr.f32.gmra.mxu0 %v348
        %v581 = vpop.f32.mrf.mxu0
        %v582 = vadd.f32 %v373, %v581
        %v583 = vpop.f32.mrf.mxu0
        %584 = vmatprep.mubr.f32.mxu0 0.0
        %585 = vmatmul.mubr.f32.gmra.mxu0 %v349
        %v586 = vpop.f32.mrf.mxu0
        %v587 = vadd.f32 %v373, %v586
        %v588 = vpop.f32.mrf.mxu0
        %589 = vmatprep.mubr.f32.mxu0 0.0
        %590 = vmatmul.mubr.f32.gmra.mxu0 %v350
        %v591 = vpop.f32.mrf.mxu0
        %v592 = vadd.f32 %v373, %v591
        %v593 = vpop.f32.mrf.mxu0
        %594 = vmatprep.mubr.f32.mxu0 0.0
        %595 = vmatmul.mubr.f32.gmra.mxu0 %v351
        %v596 = vpop.f32.mrf.mxu0
        %v597 = vadd.f32 %v373, %v596
        %v598 = vpop.f32.mrf.mxu0
        %599 = vdwg.mxu0
        %vm600 = vcmp.ge.f32.partialorder %v442, 0.0
        %vm601 = vcmp.ge.f32.partialorder %v447, 0.0
        %vm602 = vcmp.ge.f32.partialorder %v452, 0.0
        %vm603 = vcmp.ge.f32.partialorder %v457, 0.0
        %vm604 = vcmp.ge.f32.partialorder %v462, 0.0
        %vm605 = vcmp.ge.f32.partialorder %v467, 0.0
        %vm606 = vcmp.ge.f32.partialorder %v472, 0.0
        %vm607 = vcmp.ge.f32.partialorder %v477, 0.0
        %vm608 = vcmp.ge.f32.partialorder %v482, 0.0
        %vm609 = vcmp.ge.f32.partialorder %v487, 0.0
        %vm610 = vcmp.ge.f32.partialorder %v492, 0.0
        %vm611 = vcmp.ge.f32.partialorder %v497, 0.0
        %vm612 = vcmp.ge.f32.partialorder %v502, 0.0
        %vm613 = vcmp.ge.f32.partialorder %v507, 0.0
        %vm614 = vcmp.ge.f32.partialorder %v512, 0.0
        %vm615 = vcmp.ge.f32.partialorder %v517, 0.0
        %vm616 = vcmp.ge.f32.partialorder %v522, 0.0
        %vm617 = vcmp.ge.f32.partialorder %v527, 0.0
        %vm618 = vcmp.ge.f32.partialorder %v532, 0.0
        %vm619 = vcmp.ge.f32.partialorder %v537, 0.0
        %vm620 = vcmp.ge.f32.partialorder %v542, 0.0
        %vm621 = vcmp.ge.f32.partialorder %v547, 0.0
        %vm622 = vcmp.ge.f32.partialorder %v552, 0.0
        %vm623 = vcmp.ge.f32.partialorder %v557, 0.0
        %vm624 = vcmp.ge.f32.partialorder %v562, 0.0
        %vm625 = vcmp.ge.f32.partialorder %v567, 0.0
        %vm626 = vcmp.ge.f32.partialorder %v572, 0.0
        %vm627 = vcmp.ge.f32.partialorder %v577, 0.0
        %vm628 = vcmp.ge.f32.partialorder %v582, 0.0
        %vm629 = vcmp.ge.f32.partialorder %v587, 0.0
        %vm630 = vcmp.ge.f32.partialorder %v592, 0.0
        %vm631 = vcmp.ge.f32.partialorder %v597, 0.0
        %v632 = vstv %s318
        %v633 = vmul.f32 %v632, %v442
        %v634 = vmul.f32 %v632, %v447
        %v635 = vmul.f32 %v632, %v452
        %v636 = vmul.f32 %v632, %v457
        %v637 = vmul.f32 %v632, %v462
        %v638 = vmul.f32 %v632, %v467
        %v639 = vmul.f32 %v632, %v472
        %v640 = vmul.f32 %v632, %v477
        %v641 = vmul.f32 %v632, %v482
        %v642 = vmul.f32 %v632, %v487
        %v643 = vmul.f32 %v632, %v492
        %v644 = vmul.f32 %v632, %v497
        %v645 = vmul.f32 %v632, %v502
        %v646 = vmul.f32 %v632, %v507
        %v647 = vmul.f32 %v632, %v512
        %v648 = vmul.f32 %v632, %v517
        %v649 = vmul.f32 %v632, %v522
        %v650 = vmul.f32 %v632, %v527
        %v651 = vmul.f32 %v632, %v532
        %v652 = vmul.f32 %v632, %v537
        %v653 = vmul.f32 %v632, %v542
        %v654 = vmul.f32 %v632, %v547
        %v655 = vmul.f32 %v632, %v552
        %v656 = vmul.f32 %v632, %v557
        %v657 = vmul.f32 %v632, %v562
        %v658 = vmul.f32 %v632, %v567
        %v659 = vmul.f32 %v632, %v572
        %v660 = vmul.f32 %v632, %v577
        %v661 = vmul.f32 %v632, %v582
        %v662 = vmul.f32 %v632, %v587
        %v663 = vmul.f32 %v632, %v592
        %v664 = vmul.f32 %v632, %v597
        %v665 = vsel %vm600, %v442, %v633
        %v666 = vsel %vm601, %v447, %v634
        %v667 = vsel %vm602, %v452, %v635
        %v668 = vsel %vm603, %v457, %v636
        %v669 = vsel %vm604, %v462, %v637
        %v670 = vsel %vm605, %v467, %v638
        %v671 = vsel %vm606, %v472, %v639
        %v672 = vsel %vm607, %v477, %v640
        %v673 = vsel %vm608, %v482, %v641
        %v674 = vsel %vm609, %v487, %v642
        %v675 = vsel %vm610, %v492, %v643
        %v676 = vsel %vm611, %v497, %v644
        %v677 = vsel %vm612, %v502, %v645
        %v678 = vsel %vm613, %v507, %v646
        %v679 = vsel %vm614, %v512, %v647
        %v680 = vsel %vm615, %v517, %v648
        %v681 = vsel %vm616, %v522, %v649
        %v682 = vsel %vm617, %v527, %v650
        %v683 = vsel %vm618, %v532, %v651
        %v684 = vsel %vm619, %v537, %v652
        %v685 = vsel %vm620, %v542, %v653
        %v686 = vsel %vm621, %v547, %v654
        %v687 = vsel %vm622, %v552, %v655
        %v688 = vsel %vm623, %v557, %v656
        %v689 = vsel %vm624, %v562, %v657
        %v690 = vsel %vm625, %v567, %v658
        %v691 = vsel %vm626, %v572, %v659
        %v692 = vsel %vm627, %v577, %v660
        %v693 = vsel %vm628, %v582, %v661
        %v694 = vsel %vm629, %v587, %v662
        %v695 = vsel %vm630, %v592, %v663
        %v696 = vsel %vm631, %v597, %v664
        %697 = vst [vmem:[#allocation2] sm:$0xff] 0.0
        %698 = vst [vmem:[#allocation2 + $0x8] sm:$0xff] 0.0
        %699 = vst [vmem:[#allocation2 + $0x10] sm:$0xff] 0.0
        %700 = vst [vmem:[#allocation2 + $0x18] sm:$0xff] 0.0
        %s701 = scalar_lea.vmem [#allocation2], 544
        %702 = vst [vmem:[%s701] sm:$0xff] 0.0
        %703 = vst [vmem:[%s701 + $0x8] sm:$0xff] 0.0
        %704 = vst [vmem:[%s701 + $0x10] sm:$0xff] 0.0
        %705 = vst [vmem:[%s701 + $0x18] sm:$0xff] 0.0
        %706 = vst [vmem:[#allocation2] sm:$0xff] 0.0
        %707 = vst [vmem:[#allocation2 + $0x20] sm:$0xff] 0.0
        %708 = vst [vmem:[#allocation2 + $0x40] sm:$0xff] 0.0
        %709 = vst [vmem:[#allocation2 + $0x60] sm:$0xff] 0.0
        %710 = vst [vmem:[#allocation2 + $0x80] sm:$0xff] 0.0
        %711 = vst [vmem:[#allocation2 + $0xa0] sm:$0xff] 0.0
        %712 = vst [vmem:[#allocation2 + $0xc0] sm:$0xff] 0.0
        %713 = vst [vmem:[#allocation2 + $0xe0] sm:$0xff] 0.0
        %714 = vst [vmem:[#allocation2 + $0x100] sm:$0xff] 0.0
        %715 = vst [vmem:[#allocation2 + $0x120] sm:$0xff] 0.0
        %716 = vst [vmem:[#allocation2 + $0x140] sm:$0xff] 0.0
        %717 = vst [vmem:[#allocation2 + $0x160] sm:$0xff] 0.0
        %718 = vst [vmem:[#allocation2 + $0x180] sm:$0xff] 0.0
        %719 = vst [vmem:[#allocation2 + $0x1a0] sm:$0xff] 0.0
        %720 = vst [vmem:[#allocation2 + $0x1c0] sm:$0xff] 0.0
        %721 = vst [vmem:[#allocation2 + $0x1e0] sm:$0xff] 0.0
        %722 = vst [vmem:[#allocation2 + $0x200] sm:$0xff] 0.0
        %723 = vst [vmem:[#allocation2 + $0x220] sm:$0xff] 0.0
        %724 = vst [vmem:[#allocation2 + $0x18] sm:$0xff] 0.0
        %725 = vst [vmem:[#allocation2 + $0x38] sm:$0xff] 0.0
        %726 = vst [vmem:[#allocation2 + $0x58] sm:$0xff] 0.0
        %727 = vst [vmem:[#allocation2 + $0x78] sm:$0xff] 0.0
        %728 = vst [vmem:[#allocation2 + $0x98] sm:$0xff] 0.0
        %729 = vst [vmem:[#allocation2 + $0xb8] sm:$0xff] 0.0
        %730 = vst [vmem:[#allocation2 + $0xd8] sm:$0xff] 0.0
        %731 = vst [vmem:[#allocation2 + $0xf8] sm:$0xff] 0.0
        %732 = vst [vmem:[#allocation2 + $0x118] sm:$0xff] 0.0
        %733 = vst [vmem:[#allocation2 + $0x138] sm:$0xff] 0.0
        %734 = vst [vmem:[#allocation2 + $0x158] sm:$0xff] 0.0
        %735 = vst [vmem:[#allocation2 + $0x178] sm:$0xff] 0.0
        %736 = vst [vmem:[#allocation2 + $0x198] sm:$0xff] 0.0
        %737 = vst [vmem:[#allocation2 + $0x1b8] sm:$0xff] 0.0
        %738 = vst [vmem:[#allocation2 + $0x1d8] sm:$0xff] 0.0
        %739 = vst [vmem:[#allocation2 + $0x1f8] sm:$0xff] 0.0
        %740 = vst [vmem:[#allocation2 + $0x218] sm:$0xff] 0.0
        %741 = vst [vmem:[#allocation2 + $0x238] sm:$0xff] 0.0
        %s742 = scalar_lea.vmem [#allocation2], 32
        %743 = vst [vmem:[%s742 + $0x8] sm:$0xff] %v665
        %744 = vst [vmem:[%s742 + $0x10] sm:$0xff] %v666
        %745 = vst [vmem:[%s742 + $0x28] sm:$0xff] %v667
        %746 = vst [vmem:[%s742 + $0x30] sm:$0xff] %v668
        %747 = vst [vmem:[%s742 + $0x48] sm:$0xff] %v669
        %748 = vst [vmem:[%s742 + $0x50] sm:$0xff] %v670
        %749 = vst [vmem:[%s742 + $0x68] sm:$0xff] %v671
        %750 = vst [vmem:[%s742 + $0x70] sm:$0xff] %v672
        %751 = vst [vmem:[%s742 + $0x88] sm:$0xff] %v673
        %752 = vst [vmem:[%s742 + $0x90] sm:$0xff] %v674
        %753 = vst [vmem:[%s742 + $0xa8] sm:$0xff] %v675
        %754 = vst [vmem:[%s742 + $0xb0] sm:$0xff] %v676
        %755 = vst [vmem:[%s742 + $0xc8] sm:$0xff] %v677
        %756 = vst [vmem:[%s742 + $0xd0] sm:$0xff] %v678
        %757 = vst [vmem:[%s742 + $0xe8] sm:$0xff] %v679
        %758 = vst [vmem:[%s742 + $0xf0] sm:$0xff] %v680
        %759 = vst [vmem:[%s742 + $0x108] sm:$0xff] %v681
        %760 = vst [vmem:[%s742 + $0x110] sm:$0xff] %v682
        %761 = vst [vmem:[%s742 + $0x128] sm:$0xff] %v683
        %762 = vst [vmem:[%s742 + $0x130] sm:$0xff] %v684
        %763 = vst [vmem:[%s742 + $0x148] sm:$0xff] %v685
        %764 = vst [vmem:[%s742 + $0x150] sm:$0xff] %v686
        %765 = vst [vmem:[%s742 + $0x168] sm:$0xff] %v687
        %766 = vst [vmem:[%s742 + $0x170] sm:$0xff] %v688
        %767 = vst [vmem:[%s742 + $0x188] sm:$0xff] %v689
        %768 = vst [vmem:[%s742 + $0x190] sm:$0xff] %v690
        %769 = vst [vmem:[%s742 + $0x1a8] sm:$0xff] %v691
        %770 = vst [vmem:[%s742 + $0x1b0] sm:$0xff] %v692
        %771 = vst [vmem:[%s742 + $0x1c8] sm:$0xff] %v693
        %772 = vst [vmem:[%s742 + $0x1d0] sm:$0xff] %v694
        %773 = vst [vmem:[%s742 + $0x1e8] sm:$0xff] %v695
        %774 = vst [vmem:[%s742 + $0x1f0] sm:$0xff] %v696
        %v775 = vld [vmem:[%s4] sm:$0xff]
        %v776 = vld [vmem:[%s4 + $0x8] sm:$0x1]
        %v777 = vld [vmem:[#allocation2 + $0x7] sm:$0xff]
        %v778 = vld [vmem:[#allocation2 + $0xf] sm:$0xff]
        %v779 = vld [vmem:[#allocation2 + $0x27] sm:$0xff]
        %v780 = vld [vmem:[#allocation2 + $0x2f] sm:$0xff]
        %v781 = vld [vmem:[#allocation2 + $0x47] sm:$0xff]
        %v782 = vld [vmem:[#allocation2 + $0x4f] sm:$0xff]
        %v783 = vld [vmem:[#allocation2 + $0x67] sm:$0xff]
        %v784 = vld [vmem:[#allocation2 + $0x6f] sm:$0xff]
        %v785 = vld [vmem:[#allocation2 + $0x87] sm:$0xff]
        %v786 = vld [vmem:[#allocation2 + $0x8f] sm:$0xff]
        %v787 = vld [vmem:[#allocation2 + $0xa7] sm:$0xff]
        %v788 = vld [vmem:[#allocation2 + $0xaf] sm:$0xff]
        %v789 = vld [vmem:[#allocation2 + $0xc7] sm:$0xff]
        %v790 = vld [vmem:[#allocation2 + $0xcf] sm:$0xff]
        %v791 = vld [vmem:[#allocation2 + $0xe7] sm:$0xff]
        %v792 = vld [vmem:[#allocation2 + $0xef] sm:$0xff]
        %v793 = vld [vmem:[#allocation2 + $0x107] sm:$0xff]
        %v794 = vld [vmem:[#allocation2 + $0x10f] sm:$0xff]
        %v795 = vld [vmem:[#allocation2 + $0x127] sm:$0xff]
        %v796 = vld [vmem:[#allocation2 + $0x12f] sm:$0xff]
        %v797 = vld [vmem:[#allocation2 + $0x147] sm:$0xff]
        %v798 = vld [vmem:[#allocation2 + $0x14f] sm:$0xff]
        %v799 = vld [vmem:[#allocation2 + $0x167] sm:$0xff]
        %v800 = vld [vmem:[#allocation2 + $0x16f] sm:$0xff]
        %v801 = vld [vmem:[#allocation2 + $0x187] sm:$0xff]
        %v802 = vld [vmem:[#allocation2 + $0x18f] sm:$0xff]
        %v803 = vld [vmem:[#allocation2 + $0x1a7] sm:$0xff]
        %v804 = vld [vmem:[#allocation2 + $0x1af] sm:$0xff]
        %v805 = vld [vmem:[#allocation2 + $0x1c7] sm:$0xff]
        %v806 = vld [vmem:[#allocation2 + $0x1cf] sm:$0xff]
        %v807 = vld [vmem:[#allocation2 + $0x1e7] sm:$0xff]
        %v808 = vld [vmem:[#allocation2 + $0x1ef] sm:$0xff]
        %v809 = vlaneseq
        %v810 = vshrl.u32 %v809, 7
        %v811 = vsub.s32 0, %v810
        %v812 = vrot.slane %v775, %v811
        %v813 = vmul.f32 %v777, %v812
        %v814 = vmul.f32 %v778, %v812
        %v815 = vmul.f32 %v779, %v812
        %v816 = vmul.f32 %v780, %v812
        %v817 = vmul.f32 %v781, %v812
        %v818 = vmul.f32 %v782, %v812
        %v819 = vmul.f32 %v783, %v812
        %v820 = vmul.f32 %v784, %v812
        %v821 = vmul.f32 %v785, %v812
        %v822 = vmul.f32 %v786, %v812
        %v823 = vmul.f32 %v787, %v812
        %v824 = vmul.f32 %v788, %v812
        %v825 = vmul.f32 %v789, %v812
        %v826 = vmul.f32 %v790, %v812
        %v827 = vmul.f32 %v791, %v812
        %v828 = vmul.f32 %v792, %v812
        %v829 = vmul.f32 %v793, %v812
        %v830 = vmul.f32 %v794, %v812
        %v831 = vmul.f32 %v795, %v812
        %v832 = vmul.f32 %v796, %v812
        %v833 = vmul.f32 %v797, %v812
        %v834 = vmul.f32 %v798, %v812
        %v835 = vmul.f32 %v799, %v812
        %v836 = vmul.f32 %v800, %v812
        %v837 = vmul.f32 %v801, %v812
        %v838 = vmul.f32 %v802, %v812
        %v839 = vmul.f32 %v803, %v812
        %v840 = vmul.f32 %v804, %v812
        %v841 = vmul.f32 %v805, %v812
        %v842 = vmul.f32 %v806, %v812
        %v843 = vmul.f32 %v807, %v812
        %v844 = vmul.f32 %v808, %v812
        %v845 = vld [vmem:[#allocation2 + $0x8] sm:$0xff]
        %v846 = vld [vmem:[#allocation2 + $0x10] sm:$0xff]
        %v847 = vld [vmem:[#allocation2 + $0x28] sm:$0xff]
        %v848 = vld [vmem:[#allocation2 + $0x30] sm:$0xff]
        %v849 = vld [vmem:[#allocation2 + $0x48] sm:$0xff]
        %v850 = vld [vmem:[#allocation2 + $0x50] sm:$0xff]
        %v851 = vld [vmem:[#allocation2 + $0x68] sm:$0xff]
        %v852 = vld [vmem:[#allocation2 + $0x70] sm:$0xff]
        %v853 = vld [vmem:[#allocation2 + $0x88] sm:$0xff]
        %v854 = vld [vmem:[#allocation2 + $0x90] sm:$0xff]
        %v855 = vld [vmem:[#allocation2 + $0xa8] sm:$0xff]
        %v856 = vld [vmem:[#allocation2 + $0xb0] sm:$0xff]
        %v857 = vld [vmem:[#allocation2 + $0xc8] sm:$0xff]
        %v858 = vld [vmem:[#allocation2 + $0xd0] sm:$0xff]
        %v859 = vld [vmem:[#allocation2 + $0xe8] sm:$0xff]
        %v860 = vld [vmem:[#allocation2 + $0xf0] sm:$0xff]
        %v861 = vld [vmem:[#allocation2 + $0x108] sm:$0xff]
        %v862 = vld [vmem:[#allocation2 + $0x110] sm:$0xff]
        %v863 = vld [vmem:[#allocation2 + $0x128] sm:$0xff]
        %v864 = vld [vmem:[#allocation2 + $0x130] sm:$0xff]
        %v865 = vld [vmem:[#allocation2 + $0x148] sm:$0xff]
        %v866 = vld [vmem:[#allocation2 + $0x150] sm:$0xff]
        %v867 = vld [vmem:[#allocation2 + $0x168] sm:$0xff]
        %v868 = vld [vmem:[#allocation2 + $0x170] sm:$0xff]
        %v869 = vld [vmem:[#allocation2 + $0x188] sm:$0xff]
        %v870 = vld [vmem:[#allocation2 + $0x190] sm:$0xff]
        %v871 = vld [vmem:[#allocation2 + $0x1a8] sm:$0xff]
        %v872 = vld [vmem:[#allocation2 + $0x1b0] sm:$0xff]
        %v873 = vld [vmem:[#allocation2 + $0x1c8] sm:$0xff]
        %v874 = vld [vmem:[#allocation2 + $0x1d0] sm:$0xff]
        %v875 = vld [vmem:[#allocation2 + $0x1e8] sm:$0xff]
        %v876 = vld [vmem:[#allocation2 + $0x1f0] sm:$0xff]
        %v877 = vlaneseq
        %v878 = vshrl.u32 %v877, 7
        %v879 = vsub.s32 1, %v878
        %v880 = vrot.slane %v775, %v879
        %v881 = vmul.f32 %v845, %v880
        %v882 = vmul.f32 %v846, %v880
        %v883 = vmul.f32 %v847, %v880
        %v884 = vmul.f32 %v848, %v880
        %v885 = vmul.f32 %v849, %v880
        %v886 = vmul.f32 %v850, %v880
        %v887 = vmul.f32 %v851, %v880
        %v888 = vmul.f32 %v852, %v880
        %v889 = vmul.f32 %v853, %v880
        %v890 = vmul.f32 %v854, %v880
        %v891 = vmul.f32 %v855, %v880
        %v892 = vmul.f32 %v856, %v880
        %v893 = vmul.f32 %v857, %v880
        %v894 = vmul.f32 %v858, %v880
        %v895 = vmul.f32 %v859, %v880
        %v896 = vmul.f32 %v860, %v880
        %v897 = vmul.f32 %v861, %v880
        %v898 = vmul.f32 %v862, %v880
        %v899 = vmul.f32 %v863, %v880
        %v900 = vmul.f32 %v864, %v880
        %v901 = vmul.f32 %v865, %v880
        %v902 = vmul.f32 %v866, %v880
        %v903 = vmul.f32 %v867, %v880
        %v904 = vmul.f32 %v868, %v880
        %v905 = vmul.f32 %v869, %v880
        %v906 = vmul.f32 %v870, %v880
        %v907 = vmul.f32 %v871, %v880
        %v908 = vmul.f32 %v872, %v880
        %v909 = vmul.f32 %v873, %v880
        %v910 = vmul.f32 %v874, %v880
        %v911 = vmul.f32 %v875, %v880
        %v912 = vmul.f32 %v876, %v880
        %v913 = vadd.f32 %v813, %v881
        %v914 = vadd.f32 %v814, %v882
        %v915 = vadd.f32 %v815, %v883
        %v916 = vadd.f32 %v816, %v884
        %v917 = vadd.f32 %v817, %v885
        %v918 = vadd.f32 %v818, %v886
        %v919 = vadd.f32 %v819, %v887
        %v920 = vadd.f32 %v820, %v888
        %v921 = vadd.f32 %v821, %v889
        %v922 = vadd.f32 %v822, %v890
        %v923 = vadd.f32 %v823, %v891
        %v924 = vadd.f32 %v824, %v892
        %v925 = vadd.f32 %v825, %v893
        %v926 = vadd.f32 %v826, %v894
        %v927 = vadd.f32 %v827, %v895
        %v928 = vadd.f32 %v828, %v896
        %v929 = vadd.f32 %v829, %v897
        %v930 = vadd.f32 %v830, %v898
        %v931 = vadd.f32 %v831, %v899
        %v932 = vadd.f32 %v832, %v900
        %v933 = vadd.f32 %v833, %v901
        %v934 = vadd.f32 %v834, %v902
        %v935 = vadd.f32 %v835, %v903
        %v936 = vadd.f32 %v836, %v904
        %v937 = vadd.f32 %v837, %v905
        %v938 = vadd.f32 %v838, %v906
        %v939 = vadd.f32 %v839, %v907
        %v940 = vadd.f32 %v840, %v908
        %v941 = vadd.f32 %v841, %v909
        %v942 = vadd.f32 %v842, %v910
        %v943 = vadd.f32 %v843, %v911
        %v944 = vadd.f32 %v844, %v912
        %v945 = vld [vmem:[#allocation2 + $0x9] sm:$0xff]
        %v946 = vld [vmem:[#allocation2 + $0x11] sm:$0xff]
        %v947 = vld [vmem:[#allocation2 + $0x29] sm:$0xff]
        %v948 = vld [vmem:[#allocation2 + $0x31] sm:$0xff]
        %v949 = vld [vmem:[#allocation2 + $0x49] sm:$0xff]
        %v950 = vld [vmem:[#allocation2 + $0x51] sm:$0xff]
        %v951 = vld [vmem:[#allocation2 + $0x69] sm:$0xff]
        %v952 = vld [vmem:[#allocation2 + $0x71] sm:$0xff]
        %v953 = vld [vmem:[#allocation2 + $0x89] sm:$0xff]
        %v954 = vld [vmem:[#allocation2 + $0x91] sm:$0xff]
        %v955 = vld [vmem:[#allocation2 + $0xa9] sm:$0xff]
        %v956 = vld [vmem:[#allocation2 + $0xb1] sm:$0xff]
        %v957 = vld [vmem:[#allocation2 + $0xc9] sm:$0xff]
        %v958 = vld [vmem:[#allocation2 + $0xd1] sm:$0xff]
        %v959 = vld [vmem:[#allocation2 + $0xe9] sm:$0xff]
        %v960 = vld [vmem:[#allocation2 + $0xf1] sm:$0xff]
        %v961 = vld [vmem:[#allocation2 + $0x109] sm:$0xff]
        %v962 = vld [vmem:[#allocation2 + $0x111] sm:$0xff]
        %v963 = vld [vmem:[#allocation2 + $0x129] sm:$0xff]
        %v964 = vld [vmem:[#allocation2 + $0x131] sm:$0xff]
        %v965 = vld [vmem:[#allocation2 + $0x149] sm:$0xff]
        %v966 = vld [vmem:[#allocation2 + $0x151] sm:$0xff]
        %v967 = vld [vmem:[#allocation2 + $0x169] sm:$0xff]
        %v968 = vld [vmem:[#allocation2 + $0x171] sm:$0xff]
        %v969 = vld [vmem:[#allocation2 + $0x189] sm:$0xff]
        %v970 = vld [vmem:[#allocation2 + $0x191] sm:$0xff]
        %v971 = vld [vmem:[#allocation2 + $0x1a9] sm:$0xff]
        %v972 = vld [vmem:[#allocation2 + $0x1b1] sm:$0xff]
        %v973 = vld [vmem:[#allocation2 + $0x1c9] sm:$0xff]
        %v974 = vld [vmem:[#allocation2 + $0x1d1] sm:$0xff]
        %v975 = vld [vmem:[#allocation2 + $0x1e9] sm:$0xff]
        %v976 = vld [vmem:[#allocation2 + $0x1f1] sm:$0xff]
        %v977 = vlaneseq
        %v978 = vshrl.u32 %v977, 7
        %v979 = vsub.s32 2, %v978
        %v980 = vrot.slane %v775, %v979
        %v981 = vmul.f32 %v945, %v980
        %v982 = vmul.f32 %v946, %v980
        %v983 = vmul.f32 %v947, %v980
        %v984 = vmul.f32 %v948, %v980
        %v985 = vmul.f32 %v949, %v980
        %v986 = vmul.f32 %v950, %v980
        %v987 = vmul.f32 %v951, %v980
        %v988 = vmul.f32 %v952, %v980
        %v989 = vmul.f32 %v953, %v980
        %v990 = vmul.f32 %v954, %v980
        %v991 = vmul.f32 %v955, %v980
        %v992 = vmul.f32 %v956, %v980
        %v993 = vmul.f32 %v957, %v980
        %v994 = vmul.f32 %v958, %v980
        %v995 = vmul.f32 %v959, %v980
        %v996 = vmul.f32 %v960, %v980
        %v997 = vmul.f32 %v961, %v980
        %v998 = vmul.f32 %v962, %v980
        %v999 = vmul.f32 %v963, %v980
        %v1000 = vmul.f32 %v964, %v980
        %v1001 = vmul.f32 %v965, %v980
        %v1002 = vmul.f32 %v966, %v980
        %v1003 = vmul.f32 %v967, %v980
        %v1004 = vmul.f32 %v968, %v980
        %v1005 = vmul.f32 %v969, %v980
        %v1006 = vmul.f32 %v970, %v980
        %v1007 = vmul.f32 %v971, %v980
        %v1008 = vmul.f32 %v972, %v980
        %v1009 = vmul.f32 %v973, %v980
        %v1010 = vmul.f32 %v974, %v980
        %v1011 = vmul.f32 %v975, %v980
        %v1012 = vmul.f32 %v976, %v980
        %v1013 = vadd.f32 %v913, %v981
        %v1014 = vadd.f32 %v914, %v982
        %v1015 = vadd.f32 %v915, %v983
        %v1016 = vadd.f32 %v916, %v984
        %v1017 = vadd.f32 %v917, %v985
        %v1018 = vadd.f32 %v918, %v986
        %v1019 = vadd.f32 %v919, %v987
        %v1020 = vadd.f32 %v920, %v988
        %v1021 = vadd.f32 %v921, %v989
        %v1022 = vadd.f32 %v922, %v990
        %v1023 = vadd.f32 %v923, %v991
        %v1024 = vadd.f32 %v924, %v992
        %v1025 = vadd.f32 %v925, %v993
        %v1026 = vadd.f32 %v926, %v994
        %v1027 = vadd.f32 %v927, %v995
        %v1028 = vadd.f32 %v928, %v996
        %v1029 = vadd.f32 %v929, %v997
        %v1030 = vadd.f32 %v930, %v998
        %v1031 = vadd.f32 %v931, %v999
        %v1032 = vadd.f32 %v932, %v1000
        %v1033 = vadd.f32 %v933, %v1001
        %v1034 = vadd.f32 %v934, %v1002
        %v1035 = vadd.f32 %v935, %v1003
        %v1036 = vadd.f32 %v936, %v1004
        %v1037 = vadd.f32 %v937, %v1005
        %v1038 = vadd.f32 %v938, %v1006
        %v1039 = vadd.f32 %v939, %v1007
        %v1040 = vadd.f32 %v940, %v1008
        %v1041 = vadd.f32 %v941, %v1009
        %v1042 = vadd.f32 %v942, %v1010
        %v1043 = vadd.f32 %v943, %v1011
        %v1044 = vadd.f32 %v944, %v1012
        %v1045 = vld [vmem:[%s742 + $0x7] sm:$0xff]
        %v1046 = vld [vmem:[%s742 + $0xf] sm:$0xff]
        %v1047 = vld [vmem:[%s742 + $0x27] sm:$0xff]
        %v1048 = vld [vmem:[%s742 + $0x2f] sm:$0xff]
        %v1049 = vld [vmem:[%s742 + $0x47] sm:$0xff]
        %v1050 = vld [vmem:[%s742 + $0x4f] sm:$0xff]
        %v1051 = vld [vmem:[%s742 + $0x67] sm:$0xff]
        %v1052 = vld [vmem:[%s742 + $0x6f] sm:$0xff]
        %v1053 = vld [vmem:[%s742 + $0x87] sm:$0xff]
        %v1054 = vld [vmem:[%s742 + $0x8f] sm:$0xff]
        %v1055 = vld [vmem:[%s742 + $0xa7] sm:$0xff]
        %v1056 = vld [vmem:[%s742 + $0xaf] sm:$0xff]
        %v1057 = vld [vmem:[%s742 + $0xc7] sm:$0xff]
        %v1058 = vld [vmem:[%s742 + $0xcf] sm:$0xff]
        %v1059 = vld [vmem:[%s742 + $0xe7] sm:$0xff]
        %v1060 = vld [vmem:[%s742 + $0xef] sm:$0xff]
        %v1061 = vld [vmem:[%s742 + $0x107] sm:$0xff]
        %v1062 = vld [vmem:[%s742 + $0x10f] sm:$0xff]
        %v1063 = vld [vmem:[%s742 + $0x127] sm:$0xff]
        %v1064 = vld [vmem:[%s742 + $0x12f] sm:$0xff]
        %v1065 = vld [vmem:[%s742 + $0x147] sm:$0xff]
        %v1066 = vld [vmem:[%s742 + $0x14f] sm:$0xff]
        %v1067 = vld [vmem:[%s742 + $0x167] sm:$0xff]
        %v1068 = vld [vmem:[%s742 + $0x16f] sm:$0xff]
        %v1069 = vld [vmem:[%s742 + $0x187] sm:$0xff]
        %v1070 = vld [vmem:[%s742 + $0x18f] sm:$0xff]
        %v1071 = vld [vmem:[%s742 + $0x1a7] sm:$0xff]
        %v1072 = vld [vmem:[%s742 + $0x1af] sm:$0xff]
        %v1073 = vld [vmem:[%s742 + $0x1c7] sm:$0xff]
        %v1074 = vld [vmem:[%s742 + $0x1cf] sm:$0xff]
        %v1075 = vld [vmem:[%s742 + $0x1e7] sm:$0xff]
        %v1076 = vld [vmem:[%s742 + $0x1ef] sm:$0xff]
        %v1077 = vlaneseq
        %v1078 = vshrl.u32 %v1077, 7
        %v1079 = vsub.s32 3, %v1078
        %v1080 = vrot.slane %v775, %v1079
        %v1081 = vmul.f32 %v1045, %v1080
        %v1082 = vmul.f32 %v1046, %v1080
        %v1083 = vmul.f32 %v1047, %v1080
        %v1084 = vmul.f32 %v1048, %v1080
        %v1085 = vmul.f32 %v1049, %v1080
        %v1086 = vmul.f32 %v1050, %v1080
        %v1087 = vmul.f32 %v1051, %v1080
        %v1088 = vmul.f32 %v1052, %v1080
        %v1089 = vmul.f32 %v1053, %v1080
        %v1090 = vmul.f32 %v1054, %v1080
        %v1091 = vmul.f32 %v1055, %v1080
        %v1092 = vmul.f32 %v1056, %v1080
        %v1093 = vmul.f32 %v1057, %v1080
        %v1094 = vmul.f32 %v1058, %v1080
        %v1095 = vmul.f32 %v1059, %v1080
        %v1096 = vmul.f32 %v1060, %v1080
        %v1097 = vmul.f32 %v1061, %v1080
        %v1098 = vmul.f32 %v1062, %v1080
        %v1099 = vmul.f32 %v1063, %v1080
        %v1100 = vmul.f32 %v1064, %v1080
        %v1101 = vmul.f32 %v1065, %v1080
        %v1102 = vmul.f32 %v1066, %v1080
        %v1103 = vmul.f32 %v1067, %v1080
        %v1104 = vmul.f32 %v1068, %v1080
        %v1105 = vmul.f32 %v1069, %v1080
        %v1106 = vmul.f32 %v1070, %v1080
        %v1107 = vmul.f32 %v1071, %v1080
        %v1108 = vmul.f32 %v1072, %v1080
        %v1109 = vmul.f32 %v1073, %v1080
        %v1110 = vmul.f32 %v1074, %v1080
        %v1111 = vmul.f32 %v1075, %v1080
        %v1112 = vmul.f32 %v1076, %v1080
        %v1113 = vadd.f32 %v1013, %v1081
        %v1114 = vadd.f32 %v1014, %v1082
        %v1115 = vadd.f32 %v1015, %v1083
        %v1116 = vadd.f32 %v1016, %v1084
        %v1117 = vadd.f32 %v1017, %v1085
        %v1118 = vadd.f32 %v1018, %v1086
        %v1119 = vadd.f32 %v1019, %v1087
        %v1120 = vadd.f32 %v1020, %v1088
        %v1121 = vadd.f32 %v1021, %v1089
        %v1122 = vadd.f32 %v1022, %v1090
        %v1123 = vadd.f32 %v1023, %v1091
        %v1124 = vadd.f32 %v1024, %v1092
        %v1125 = vadd.f32 %v1025, %v1093
        %v1126 = vadd.f32 %v1026, %v1094
        %v1127 = vadd.f32 %v1027, %v1095
        %v1128 = vadd.f32 %v1028, %v1096
        %v1129 = vadd.f32 %v1029, %v1097
        %v1130 = vadd.f32 %v1030, %v1098
        %v1131 = vadd.f32 %v1031, %v1099
        %v1132 = vadd.f32 %v1032, %v1100
        %v1133 = vadd.f32 %v1033, %v1101
        %v1134 = vadd.f32 %v1034, %v1102
        %v1135 = vadd.f32 %v1035, %v1103
        %v1136 = vadd.f32 %v1036, %v1104
        %v1137 = vadd.f32 %v1037, %v1105
        %v1138 = vadd.f32 %v1038, %v1106
        %v1139 = vadd.f32 %v1039, %v1107
        %v1140 = vadd.f32 %v1040, %v1108
        %v1141 = vadd.f32 %v1041, %v1109
        %v1142 = vadd.f32 %v1042, %v1110
        %v1143 = vadd.f32 %v1043, %v1111
        %v1144 = vadd.f32 %v1044, %v1112
        %v1145 = vld [vmem:[%s742 + $0x8] sm:$0xff]
        %v1146 = vld [vmem:[%s742 + $0x10] sm:$0xff]
        %v1147 = vld [vmem:[%s742 + $0x28] sm:$0xff]
        %v1148 = vld [vmem:[%s742 + $0x30] sm:$0xff]
        %v1149 = vld [vmem:[%s742 + $0x48] sm:$0xff]
        %v1150 = vld [vmem:[%s742 + $0x50] sm:$0xff]
        %v1151 = vld [vmem:[%s742 + $0x68] sm:$0xff]
        %v1152 = vld [vmem:[%s742 + $0x70] sm:$0xff]
        %v1153 = vld [vmem:[%s742 + $0x88] sm:$0xff]
        %v1154 = vld [vmem:[%s742 + $0x90] sm:$0xff]
        %v1155 = vld [vmem:[%s742 + $0xa8] sm:$0xff]
        %v1156 = vld [vmem:[%s742 + $0xb0] sm:$0xff]
        %v1157 = vld [vmem:[%s742 + $0xc8] sm:$0xff]
        %v1158 = vld [vmem:[%s742 + $0xd0] sm:$0xff]
        %v1159 = vld [vmem:[%s742 + $0xe8] sm:$0xff]
        %v1160 = vld [vmem:[%s742 + $0xf0] sm:$0xff]
        %v1161 = vld [vmem:[%s742 + $0x108] sm:$0xff]
        %v1162 = vld [vmem:[%s742 + $0x110] sm:$0xff]
        %v1163 = vld [vmem:[%s742 + $0x128] sm:$0xff]
        %v1164 = vld [vmem:[%s742 + $0x130] sm:$0xff]
        %v1165 = vld [vmem:[%s742 + $0x148] sm:$0xff]
        %v1166 = vld [vmem:[%s742 + $0x150] sm:$0xff]
        %v1167 = vld [vmem:[%s742 + $0x168] sm:$0xff]
        %v1168 = vld [vmem:[%s742 + $0x170] sm:$0xff]
        %v1169 = vld [vmem:[%s742 + $0x188] sm:$0xff]
        %v1170 = vld [vmem:[%s742 + $0x190] sm:$0xff]
        %v1171 = vld [vmem:[%s742 + $0x1a8] sm:$0xff]
        %v1172 = vld [vmem:[%s742 + $0x1b0] sm:$0xff]
        %v1173 = vld [vmem:[%s742 + $0x1c8] sm:$0xff]
        %v1174 = vld [vmem:[%s742 + $0x1d0] sm:$0xff]
        %v1175 = vld [vmem:[%s742 + $0x1e8] sm:$0xff]
        %v1176 = vld [vmem:[%s742 + $0x1f0] sm:$0xff]
        %v1177 = vlaneseq
        %v1178 = vshrl.u32 %v1177, 7
        %v1179 = vsub.s32 4, %v1178
        %v1180 = vrot.slane %v775, %v1179
        %v1181 = vmul.f32 %v1145, %v1180
        %v1182 = vmul.f32 %v1146, %v1180
        %v1183 = vmul.f32 %v1147, %v1180
        %v1184 = vmul.f32 %v1148, %v1180
        %v1185 = vmul.f32 %v1149, %v1180
        %v1186 = vmul.f32 %v1150, %v1180
        %v1187 = vmul.f32 %v1151, %v1180
        %v1188 = vmul.f32 %v1152, %v1180
        %v1189 = vmul.f32 %v1153, %v1180
        %v1190 = vmul.f32 %v1154, %v1180
        %v1191 = vmul.f32 %v1155, %v1180
        %v1192 = vmul.f32 %v1156, %v1180
        %v1193 = vmul.f32 %v1157, %v1180
        %v1194 = vmul.f32 %v1158, %v1180
        %v1195 = vmul.f32 %v1159, %v1180
        %v1196 = vmul.f32 %v1160, %v1180
        %v1197 = vmul.f32 %v1161, %v1180
        %v1198 = vmul.f32 %v1162, %v1180
        %v1199 = vmul.f32 %v1163, %v1180
        %v1200 = vmul.f32 %v1164, %v1180
        %v1201 = vmul.f32 %v1165, %v1180
        %v1202 = vmul.f32 %v1166, %v1180
        %v1203 = vmul.f32 %v1167, %v1180
        %v1204 = vmul.f32 %v1168, %v1180
        %v1205 = vmul.f32 %v1169, %v1180
        %v1206 = vmul.f32 %v1170, %v1180
        %v1207 = vmul.f32 %v1171, %v1180
        %v1208 = vmul.f32 %v1172, %v1180
        %v1209 = vmul.f32 %v1173, %v1180
        %v1210 = vmul.f32 %v1174, %v1180
        %v1211 = vmul.f32 %v1175, %v1180
        %v1212 = vmul.f32 %v1176, %v1180
        %v1213 = vadd.f32 %v1113, %v1181
        %v1214 = vadd.f32 %v1114, %v1182
        %v1215 = vadd.f32 %v1115, %v1183
        %v1216 = vadd.f32 %v1116, %v1184
        %v1217 = vadd.f32 %v1117, %v1185
        %v1218 = vadd.f32 %v1118, %v1186
        %v1219 = vadd.f32 %v1119, %v1187
        %v1220 = vadd.f32 %v1120, %v1188
        %v1221 = vadd.f32 %v1121, %v1189
        %v1222 = vadd.f32 %v1122, %v1190
        %v1223 = vadd.f32 %v1123, %v1191
        %v1224 = vadd.f32 %v1124, %v1192
        %v1225 = vadd.f32 %v1125, %v1193
        %v1226 = vadd.f32 %v1126, %v1194
        %v1227 = vadd.f32 %v1127, %v1195
        %v1228 = vadd.f32 %v1128, %v1196
        %v1229 = vadd.f32 %v1129, %v1197
        %v1230 = vadd.f32 %v1130, %v1198
        %v1231 = vadd.f32 %v1131, %v1199
        %v1232 = vadd.f32 %v1132, %v1200
        %v1233 = vadd.f32 %v1133, %v1201
        %v1234 = vadd.f32 %v1134, %v1202
        %v1235 = vadd.f32 %v1135, %v1203
        %v1236 = vadd.f32 %v1136, %v1204
        %v1237 = vadd.f32 %v1137, %v1205
        %v1238 = vadd.f32 %v1138, %v1206
        %v1239 = vadd.f32 %v1139, %v1207
        %v1240 = vadd.f32 %v1140, %v1208
        %v1241 = vadd.f32 %v1141, %v1209
        %v1242 = vadd.f32 %v1142, %v1210
        %v1243 = vadd.f32 %v1143, %v1211
        %v1244 = vadd.f32 %v1144, %v1212
        %v1245 = vld [vmem:[%s742 + $0x9] sm:$0xff]
        %v1246 = vld [vmem:[%s742 + $0x11] sm:$0xff]
        %v1247 = vld [vmem:[%s742 + $0x29] sm:$0xff]
        %v1248 = vld [vmem:[%s742 + $0x31] sm:$0xff]
        %v1249 = vld [vmem:[%s742 + $0x49] sm:$0xff]
        %v1250 = vld [vmem:[%s742 + $0x51] sm:$0xff]
        %v1251 = vld [vmem:[%s742 + $0x69] sm:$0xff]
        %v1252 = vld [vmem:[%s742 + $0x71] sm:$0xff]
        %v1253 = vld [vmem:[%s742 + $0x89] sm:$0xff]
        %v1254 = vld [vmem:[%s742 + $0x91] sm:$0xff]
        %v1255 = vld [vmem:[%s742 + $0xa9] sm:$0xff]
        %v1256 = vld [vmem:[%s742 + $0xb1] sm:$0xff]
        %v1257 = vld [vmem:[%s742 + $0xc9] sm:$0xff]
        %v1258 = vld [vmem:[%s742 + $0xd1] sm:$0xff]
        %v1259 = vld [vmem:[%s742 + $0xe9] sm:$0xff]
        %v1260 = vld [vmem:[%s742 + $0xf1] sm:$0xff]
        %v1261 = vld [vmem:[%s742 + $0x109] sm:$0xff]
        %v1262 = vld [vmem:[%s742 + $0x111] sm:$0xff]
        %v1263 = vld [vmem:[%s742 + $0x129] sm:$0xff]
        %v1264 = vld [vmem:[%s742 + $0x131] sm:$0xff]
        %v1265 = vld [vmem:[%s742 + $0x149] sm:$0xff]
        %v1266 = vld [vmem:[%s742 + $0x151] sm:$0xff]
        %v1267 = vld [vmem:[%s742 + $0x169] sm:$0xff]
        %v1268 = vld [vmem:[%s742 + $0x171] sm:$0xff]
        %v1269 = vld [vmem:[%s742 + $0x189] sm:$0xff]
        %v1270 = vld [vmem:[%s742 + $0x191] sm:$0xff]
        %v1271 = vld [vmem:[%s742 + $0x1a9] sm:$0xff]
        %v1272 = vld [vmem:[%s742 + $0x1b1] sm:$0xff]
        %v1273 = vld [vmem:[%s742 + $0x1c9] sm:$0xff]
        %v1274 = vld [vmem:[%s742 + $0x1d1] sm:$0xff]
        %v1275 = vld [vmem:[%s742 + $0x1e9] sm:$0xff]
        %v1276 = vld [vmem:[%s742 + $0x1f1] sm:$0xff]
        %v1277 = vlaneseq
        %v1278 = vshrl.u32 %v1277, 7
        %v1279 = vsub.s32 5, %v1278
        %v1280 = vrot.slane %v775, %v1279
        %v1281 = vmul.f32 %v1245, %v1280
        %v1282 = vmul.f32 %v1246, %v1280
        %v1283 = vmul.f32 %v1247, %v1280
        %v1284 = vmul.f32 %v1248, %v1280
        %v1285 = vmul.f32 %v1249, %v1280
        %v1286 = vmul.f32 %v1250, %v1280
        %v1287 = vmul.f32 %v1251, %v1280
        %v1288 = vmul.f32 %v1252, %v1280
        %v1289 = vmul.f32 %v1253, %v1280
        %v1290 = vmul.f32 %v1254, %v1280
        %v1291 = vmul.f32 %v1255, %v1280
        %v1292 = vmul.f32 %v1256, %v1280
        %v1293 = vmul.f32 %v1257, %v1280
        %v1294 = vmul.f32 %v1258, %v1280
        %v1295 = vmul.f32 %v1259, %v1280
        %v1296 = vmul.f32 %v1260, %v1280
        %v1297 = vmul.f32 %v1261, %v1280
        %v1298 = vmul.f32 %v1262, %v1280
        %v1299 = vmul.f32 %v1263, %v1280
        %v1300 = vmul.f32 %v1264, %v1280
        %v1301 = vmul.f32 %v1265, %v1280
        %v1302 = vmul.f32 %v1266, %v1280
        %v1303 = vmul.f32 %v1267, %v1280
        %v1304 = vmul.f32 %v1268, %v1280
        %v1305 = vmul.f32 %v1269, %v1280
        %v1306 = vmul.f32 %v1270, %v1280
        %v1307 = vmul.f32 %v1271, %v1280
        %v1308 = vmul.f32 %v1272, %v1280
        %v1309 = vmul.f32 %v1273, %v1280
        %v1310 = vmul.f32 %v1274, %v1280
        %v1311 = vmul.f32 %v1275, %v1280
        %v1312 = vmul.f32 %v1276, %v1280
        %v1313 = vadd.f32 %v1213, %v1281
        %v1314 = vadd.f32 %v1214, %v1282
        %v1315 = vadd.f32 %v1215, %v1283
        %v1316 = vadd.f32 %v1216, %v1284
        %v1317 = vadd.f32 %v1217, %v1285
        %v1318 = vadd.f32 %v1218, %v1286
        %v1319 = vadd.f32 %v1219, %v1287
        %v1320 = vadd.f32 %v1220, %v1288
        %v1321 = vadd.f32 %v1221, %v1289
        %v1322 = vadd.f32 %v1222, %v1290
        %v1323 = vadd.f32 %v1223, %v1291
        %v1324 = vadd.f32 %v1224, %v1292
        %v1325 = vadd.f32 %v1225, %v1293
        %v1326 = vadd.f32 %v1226, %v1294
        %v1327 = vadd.f32 %v1227, %v1295
        %v1328 = vadd.f32 %v1228, %v1296
        %v1329 = vadd.f32 %v1229, %v1297
        %v1330 = vadd.f32 %v1230, %v1298
        %v1331 = vadd.f32 %v1231, %v1299
        %v1332 = vadd.f32 %v1232, %v1300
        %v1333 = vadd.f32 %v1233, %v1301
        %v1334 = vadd.f32 %v1234, %v1302
        %v1335 = vadd.f32 %v1235, %v1303
        %v1336 = vadd.f32 %v1236, %v1304
        %v1337 = vadd.f32 %v1237, %v1305
        %v1338 = vadd.f32 %v1238, %v1306
        %v1339 = vadd.f32 %v1239, %v1307
        %v1340 = vadd.f32 %v1240, %v1308
        %v1341 = vadd.f32 %v1241, %v1309
        %v1342 = vadd.f32 %v1242, %v1310
        %v1343 = vadd.f32 %v1243, %v1311
        %v1344 = vadd.f32 %v1244, %v1312
        %s1345 = scalar_lea.vmem [#allocation2], 64
        %v1346 = vld [vmem:[%s1345 + $0x7] sm:$0xff]
        %v1347 = vld [vmem:[%s1345 + $0xf] sm:$0xff]
        %v1348 = vld [vmem:[%s1345 + $0x27] sm:$0xff]
        %v1349 = vld [vmem:[%s1345 + $0x2f] sm:$0xff]
        %v1350 = vld [vmem:[%s1345 + $0x47] sm:$0xff]
        %v1351 = vld [vmem:[%s1345 + $0x4f] sm:$0xff]
        %v1352 = vld [vmem:[%s1345 + $0x67] sm:$0xff]
        %v1353 = vld [vmem:[%s1345 + $0x6f] sm:$0xff]
        %v1354 = vld [vmem:[%s1345 + $0x87] sm:$0xff]
        %v1355 = vld [vmem:[%s1345 + $0x8f] sm:$0xff]
        %v1356 = vld [vmem:[%s1345 + $0xa7] sm:$0xff]
        %v1357 = vld [vmem:[%s1345 + $0xaf] sm:$0xff]
        %v1358 = vld [vmem:[%s1345 + $0xc7] sm:$0xff]
        %v1359 = vld [vmem:[%s1345 + $0xcf] sm:$0xff]
        %v1360 = vld [vmem:[%s1345 + $0xe7] sm:$0xff]
        %v1361 = vld [vmem:[%s1345 + $0xef] sm:$0xff]
        %v1362 = vld [vmem:[%s1345 + $0x107] sm:$0xff]
        %v1363 = vld [vmem:[%s1345 + $0x10f] sm:$0xff]
        %v1364 = vld [vmem:[%s1345 + $0x127] sm:$0xff]
        %v1365 = vld [vmem:[%s1345 + $0x12f] sm:$0xff]
        %v1366 = vld [vmem:[%s1345 + $0x147] sm:$0xff]
        %v1367 = vld [vmem:[%s1345 + $0x14f] sm:$0xff]
        %v1368 = vld [vmem:[%s1345 + $0x167] sm:$0xff]
        %v1369 = vld [vmem:[%s1345 + $0x16f] sm:$0xff]
        %v1370 = vld [vmem:[%s1345 + $0x187] sm:$0xff]
        %v1371 = vld [vmem:[%s1345 + $0x18f] sm:$0xff]
        %v1372 = vld [vmem:[%s1345 + $0x1a7] sm:$0xff]
        %v1373 = vld [vmem:[%s1345 + $0x1af] sm:$0xff]
        %v1374 = vld [vmem:[%s1345 + $0x1c7] sm:$0xff]
        %v1375 = vld [vmem:[%s1345 + $0x1cf] sm:$0xff]
        %v1376 = vld [vmem:[%s1345 + $0x1e7] sm:$0xff]
        %v1377 = vld [vmem:[%s1345 + $0x1ef] sm:$0xff]
        %v1378 = vlaneseq
        %v1379 = vshrl.u32 %v1378, 7
        %v1380 = vsub.s32 6, %v1379
        %v1381 = vrot.slane %v775, %v1380
        %v1382 = vmul.f32 %v1346, %v1381
        %v1383 = vmul.f32 %v1347, %v1381
        %v1384 = vmul.f32 %v1348, %v1381
        %v1385 = vmul.f32 %v1349, %v1381
        %v1386 = vmul.f32 %v1350, %v1381
        %v1387 = vmul.f32 %v1351, %v1381
        %v1388 = vmul.f32 %v1352, %v1381
        %v1389 = vmul.f32 %v1353, %v1381
        %v1390 = vmul.f32 %v1354, %v1381
        %v1391 = vmul.f32 %v1355, %v1381
        %v1392 = vmul.f32 %v1356, %v1381
        %v1393 = vmul.f32 %v1357, %v1381
        %v1394 = vmul.f32 %v1358, %v1381
        %v1395 = vmul.f32 %v1359, %v1381
        %v1396 = vmul.f32 %v1360, %v1381
        %v1397 = vmul.f32 %v1361, %v1381
        %v1398 = vmul.f32 %v1362, %v1381
        %v1399 = vmul.f32 %v1363, %v1381
        %v1400 = vmul.f32 %v1364, %v1381
        %v1401 = vmul.f32 %v1365, %v1381
        %v1402 = vmul.f32 %v1366, %v1381
        %v1403 = vmul.f32 %v1367, %v1381
        %v1404 = vmul.f32 %v1368, %v1381
        %v1405 = vmul.f32 %v1369, %v1381
        %v1406 = vmul.f32 %v1370, %v1381
        %v1407 = vmul.f32 %v1371, %v1381
        %v1408 = vmul.f32 %v1372, %v1381
        %v1409 = vmul.f32 %v1373, %v1381
        %v1410 = vmul.f32 %v1374, %v1381
        %v1411 = vmul.f32 %v1375, %v1381
        %v1412 = vmul.f32 %v1376, %v1381
        %v1413 = vmul.f32 %v1377, %v1381
        %v1414 = vadd.f32 %v1313, %v1382
        %v1415 = vadd.f32 %v1314, %v1383
        %v1416 = vadd.f32 %v1315, %v1384
        %v1417 = vadd.f32 %v1316, %v1385
        %v1418 = vadd.f32 %v1317, %v1386
        %v1419 = vadd.f32 %v1318, %v1387
        %v1420 = vadd.f32 %v1319, %v1388
        %v1421 = vadd.f32 %v1320, %v1389
        %v1422 = vadd.f32 %v1321, %v1390
        %v1423 = vadd.f32 %v1322, %v1391
        %v1424 = vadd.f32 %v1323, %v1392
        %v1425 = vadd.f32 %v1324, %v1393
        %v1426 = vadd.f32 %v1325, %v1394
        %v1427 = vadd.f32 %v1326, %v1395
        %v1428 = vadd.f32 %v1327, %v1396
        %v1429 = vadd.f32 %v1328, %v1397
        %v1430 = vadd.f32 %v1329, %v1398
        %v1431 = vadd.f32 %v1330, %v1399
        %v1432 = vadd.f32 %v1331, %v1400
        %v1433 = vadd.f32 %v1332, %v1401
        %v1434 = vadd.f32 %v1333, %v1402
        %v1435 = vadd.f32 %v1334, %v1403
        %v1436 = vadd.f32 %v1335, %v1404
        %v1437 = vadd.f32 %v1336, %v1405
        %v1438 = vadd.f32 %v1337, %v1406
        %v1439 = vadd.f32 %v1338, %v1407
        %v1440 = vadd.f32 %v1339, %v1408
        %v1441 = vadd.f32 %v1340, %v1409
        %v1442 = vadd.f32 %v1341, %v1410
        %v1443 = vadd.f32 %v1342, %v1411
        %v1444 = vadd.f32 %v1343, %v1412
        %v1445 = vadd.f32 %v1344, %v1413
        %v1446 = vld [vmem:[%s1345 + $0x8] sm:$0xff]
        %v1447 = vld [vmem:[%s1345 + $0x10] sm:$0xff]
        %v1448 = vld [vmem:[%s1345 + $0x28] sm:$0xff]
        %v1449 = vld [vmem:[%s1345 + $0x30] sm:$0xff]
        %v1450 = vld [vmem:[%s1345 + $0x48] sm:$0xff]
        %v1451 = vld [vmem:[%s1345 + $0x50] sm:$0xff]
        %v1452 = vld [vmem:[%s1345 + $0x68] sm:$0xff]
        %v1453 = vld [vmem:[%s1345 + $0x70] sm:$0xff]
        %v1454 = vld [vmem:[%s1345 + $0x88] sm:$0xff]
        %v1455 = vld [vmem:[%s1345 + $0x90] sm:$0xff]
        %v1456 = vld [vmem:[%s1345 + $0xa8] sm:$0xff]
        %v1457 = vld [vmem:[%s1345 + $0xb0] sm:$0xff]
        %v1458 = vld [vmem:[%s1345 + $0xc8] sm:$0xff]
        %v1459 = vld [vmem:[%s1345 + $0xd0] sm:$0xff]
        %v1460 = vld [vmem:[%s1345 + $0xe8] sm:$0xff]
        %v1461 = vld [vmem:[%s1345 + $0xf0] sm:$0xff]
        %v1462 = vld [vmem:[%s1345 + $0x108] sm:$0xff]
        %v1463 = vld [vmem:[%s1345 + $0x110] sm:$0xff]
        %v1464 = vld [vmem:[%s1345 + $0x128] sm:$0xff]
        %v1465 = vld [vmem:[%s1345 + $0x130] sm:$0xff]
        %v1466 = vld [vmem:[%s1345 + $0x148] sm:$0xff]
        %v1467 = vld [vmem:[%s1345 + $0x150] sm:$0xff]
        %v1468 = vld [vmem:[%s1345 + $0x168] sm:$0xff]
        %v1469 = vld [vmem:[%s1345 + $0x170] sm:$0xff]
        %v1470 = vld [vmem:[%s1345 + $0x188] sm:$0xff]
        %v1471 = vld [vmem:[%s1345 + $0x190] sm:$0xff]
        %v1472 = vld [vmem:[%s1345 + $0x1a8] sm:$0xff]
        %v1473 = vld [vmem:[%s1345 + $0x1b0] sm:$0xff]
        %v1474 = vld [vmem:[%s1345 + $0x1c8] sm:$0xff]
        %v1475 = vld [vmem:[%s1345 + $0x1d0] sm:$0xff]
        %v1476 = vld [vmem:[%s1345 + $0x1e8] sm:$0xff]
        %v1477 = vld [vmem:[%s1345 + $0x1f0] sm:$0xff]
        %v1478 = vlaneseq
        %v1479 = vshrl.u32 %v1478, 7
        %v1480 = vsub.s32 7, %v1479
        %v1481 = vrot.slane %v775, %v1480
        %v1482 = vmul.f32 %v1446, %v1481
        %v1483 = vmul.f32 %v1447, %v1481
        %v1484 = vmul.f32 %v1448, %v1481
        %v1485 = vmul.f32 %v1449, %v1481
        %v1486 = vmul.f32 %v1450, %v1481
        %v1487 = vmul.f32 %v1451, %v1481
        %v1488 = vmul.f32 %v1452, %v1481
        %v1489 = vmul.f32 %v1453, %v1481
        %v1490 = vmul.f32 %v1454, %v1481
        %v1491 = vmul.f32 %v1455, %v1481
        %v1492 = vmul.f32 %v1456, %v1481
        %v1493 = vmul.f32 %v1457, %v1481
        %v1494 = vmul.f32 %v1458, %v1481
        %v1495 = vmul.f32 %v1459, %v1481
        %v1496 = vmul.f32 %v1460, %v1481
        %v1497 = vmul.f32 %v1461, %v1481
        %v1498 = vmul.f32 %v1462, %v1481
        %v1499 = vmul.f32 %v1463, %v1481
        %v1500 = vmul.f32 %v1464, %v1481
        %v1501 = vmul.f32 %v1465, %v1481
        %v1502 = vmul.f32 %v1466, %v1481
        %v1503 = vmul.f32 %v1467, %v1481
        %v1504 = vmul.f32 %v1468, %v1481
        %v1505 = vmul.f32 %v1469, %v1481
        %v1506 = vmul.f32 %v1470, %v1481
        %v1507 = vmul.f32 %v1471, %v1481
        %v1508 = vmul.f32 %v1472, %v1481
        %v1509 = vmul.f32 %v1473, %v1481
        %v1510 = vmul.f32 %v1474, %v1481
        %v1511 = vmul.f32 %v1475, %v1481
        %v1512 = vmul.f32 %v1476, %v1481
        %v1513 = vmul.f32 %v1477, %v1481
        %v1514 = vadd.f32 %v1414, %v1482
        %v1515 = vadd.f32 %v1415, %v1483
        %v1516 = vadd.f32 %v1416, %v1484
        %v1517 = vadd.f32 %v1417, %v1485
        %v1518 = vadd.f32 %v1418, %v1486
        %v1519 = vadd.f32 %v1419, %v1487
        %v1520 = vadd.f32 %v1420, %v1488
        %v1521 = vadd.f32 %v1421, %v1489
        %v1522 = vadd.f32 %v1422, %v1490
        %v1523 = vadd.f32 %v1423, %v1491
        %v1524 = vadd.f32 %v1424, %v1492
        %v1525 = vadd.f32 %v1425, %v1493
        %v1526 = vadd.f32 %v1426, %v1494
        %v1527 = vadd.f32 %v1427, %v1495
        %v1528 = vadd.f32 %v1428, %v1496
        %v1529 = vadd.f32 %v1429, %v1497
        %v1530 = vadd.f32 %v1430, %v1498
        %v1531 = vadd.f32 %v1431, %v1499
        %v1532 = vadd.f32 %v1432, %v1500
        %v1533 = vadd.f32 %v1433, %v1501
        %v1534 = vadd.f32 %v1434, %v1502
        %v1535 = vadd.f32 %v1435, %v1503
        %v1536 = vadd.f32 %v1436, %v1504
        %v1537 = vadd.f32 %v1437, %v1505
        %v1538 = vadd.f32 %v1438, %v1506
        %v1539 = vadd.f32 %v1439, %v1507
        %v1540 = vadd.f32 %v1440, %v1508
        %v1541 = vadd.f32 %v1441, %v1509
        %v1542 = vadd.f32 %v1442, %v1510
        %v1543 = vadd.f32 %v1443, %v1511
        %v1544 = vadd.f32 %v1444, %v1512
        %v1545 = vadd.f32 %v1445, %v1513
        %v1546 = vld [vmem:[%s1345 + $0x9] sm:$0xff]
        %v1547 = vld [vmem:[%s1345 + $0x11] sm:$0xff]
        %v1548 = vld [vmem:[%s1345 + $0x29] sm:$0xff]
        %v1549 = vld [vmem:[%s1345 + $0x31] sm:$0xff]
        %v1550 = vld [vmem:[%s1345 + $0x49] sm:$0xff]
        %v1551 = vld [vmem:[%s1345 + $0x51] sm:$0xff]
        %v1552 = vld [vmem:[%s1345 + $0x69] sm:$0xff]
        %v1553 = vld [vmem:[%s1345 + $0x71] sm:$0xff]
        %v1554 = vld [vmem:[%s1345 + $0x89] sm:$0xff]
        %v1555 = vld [vmem:[%s1345 + $0x91] sm:$0xff]
        %v1556 = vld [vmem:[%s1345 + $0xa9] sm:$0xff]
        %v1557 = vld [vmem:[%s1345 + $0xb1] sm:$0xff]
        %v1558 = vld [vmem:[%s1345 + $0xc9] sm:$0xff]
        %v1559 = vld [vmem:[%s1345 + $0xd1] sm:$0xff]
        %v1560 = vld [vmem:[%s1345 + $0xe9] sm:$0xff]
        %v1561 = vld [vmem:[%s1345 + $0xf1] sm:$0xff]
        %v1562 = vld [vmem:[%s1345 + $0x109] sm:$0xff]
        %v1563 = vld [vmem:[%s1345 + $0x111] sm:$0xff]
        %v1564 = vld [vmem:[%s1345 + $0x129] sm:$0xff]
        %v1565 = vld [vmem:[%s1345 + $0x131] sm:$0xff]
        %v1566 = vld [vmem:[%s1345 + $0x149] sm:$0xff]
        %v1567 = vld [vmem:[%s1345 + $0x151] sm:$0xff]
        %v1568 = vld [vmem:[%s1345 + $0x169] sm:$0xff]
        %v1569 = vld [vmem:[%s1345 + $0x171] sm:$0xff]
        %v1570 = vld [vmem:[%s1345 + $0x189] sm:$0xff]
        %v1571 = vld [vmem:[%s1345 + $0x191] sm:$0xff]
        %v1572 = vld [vmem:[%s1345 + $0x1a9] sm:$0xff]
        %v1573 = vld [vmem:[%s1345 + $0x1b1] sm:$0xff]
        %v1574 = vld [vmem:[%s1345 + $0x1c9] sm:$0xff]
        %v1575 = vld [vmem:[%s1345 + $0x1d1] sm:$0xff]
        %v1576 = vld [vmem:[%s1345 + $0x1e9] sm:$0xff]
        %v1577 = vld [vmem:[%s1345 + $0x1f1] sm:$0xff]
        %v1578 = vlaneseq
        %v1579 = vshrl.u32 %v1578, 7
        %v1580 = vsub.s32 0, %v1579
        %v1581 = vrot.slane %v776, %v1580
        %v1582 = vmul.f32 %v1546, %v1581
        %v1583 = vmul.f32 %v1547, %v1581
        %v1584 = vmul.f32 %v1548, %v1581
        %v1585 = vmul.f32 %v1549, %v1581
        %v1586 = vmul.f32 %v1550, %v1581
        %v1587 = vmul.f32 %v1551, %v1581
        %v1588 = vmul.f32 %v1552, %v1581
        %v1589 = vmul.f32 %v1553, %v1581
        %v1590 = vmul.f32 %v1554, %v1581
        %v1591 = vmul.f32 %v1555, %v1581
        %v1592 = vmul.f32 %v1556, %v1581
        %v1593 = vmul.f32 %v1557, %v1581
        %v1594 = vmul.f32 %v1558, %v1581
        %v1595 = vmul.f32 %v1559, %v1581
        %v1596 = vmul.f32 %v1560, %v1581
        %v1597 = vmul.f32 %v1561, %v1581
        %v1598 = vmul.f32 %v1562, %v1581
        %v1599 = vmul.f32 %v1563, %v1581
        %v1600 = vmul.f32 %v1564, %v1581
        %v1601 = vmul.f32 %v1565, %v1581
        %v1602 = vmul.f32 %v1566, %v1581
        %v1603 = vmul.f32 %v1567, %v1581
        %v1604 = vmul.f32 %v1568, %v1581
        %v1605 = vmul.f32 %v1569, %v1581
        %v1606 = vmul.f32 %v1570, %v1581
        %v1607 = vmul.f32 %v1571, %v1581
        %v1608 = vmul.f32 %v1572, %v1581
        %v1609 = vmul.f32 %v1573, %v1581
        %v1610 = vmul.f32 %v1574, %v1581
        %v1611 = vmul.f32 %v1575, %v1581
        %v1612 = vmul.f32 %v1576, %v1581
        %v1613 = vmul.f32 %v1577, %v1581
        %v1614 = vadd.f32 %v1514, %v1582
        %v1615 = vadd.f32 %v1515, %v1583
        %v1616 = vadd.f32 %v1516, %v1584
        %v1617 = vadd.f32 %v1517, %v1585
        %v1618 = vadd.f32 %v1518, %v1586
        %v1619 = vadd.f32 %v1519, %v1587
        %v1620 = vadd.f32 %v1520, %v1588
        %v1621 = vadd.f32 %v1521, %v1589
        %v1622 = vadd.f32 %v1522, %v1590
        %v1623 = vadd.f32 %v1523, %v1591
        %v1624 = vadd.f32 %v1524, %v1592
        %v1625 = vadd.f32 %v1525, %v1593
        %v1626 = vadd.f32 %v1526, %v1594
        %v1627 = vadd.f32 %v1527, %v1595
        %v1628 = vadd.f32 %v1528, %v1596
        %v1629 = vadd.f32 %v1529, %v1597
        %v1630 = vadd.f32 %v1530, %v1598
        %v1631 = vadd.f32 %v1531, %v1599
        %v1632 = vadd.f32 %v1532, %v1600
        %v1633 = vadd.f32 %v1533, %v1601
        %v1634 = vadd.f32 %v1534, %v1602
        %v1635 = vadd.f32 %v1535, %v1603
        %v1636 = vadd.f32 %v1536, %v1604
        %v1637 = vadd.f32 %v1537, %v1605
        %v1638 = vadd.f32 %v1538, %v1606
        %v1639 = vadd.f32 %v1539, %v1607
        %v1640 = vadd.f32 %v1540, %v1608
        %v1641 = vadd.f32 %v1541, %v1609
        %v1642 = vadd.f32 %v1542, %v1610
        %v1643 = vadd.f32 %v1543, %v1611
        %v1644 = vadd.f32 %v1544, %v1612
        %v1645 = vadd.f32 %v1545, %v1613
        %v1646 = vld [vmem:[%s5] sm:$0x1]
        %v1648 = vlaneseq
        %v1649 = vshrl.u32 %v1648, 7
        %v1650 = vsub.s32 0, %v1649
        %v1651 = vrot.slane %v1646, %v1650
        %v1653 = vadd.f32 %v1614, %v1651
        %v1654 = vadd.f32 %v1615, %v1651
        %v1655 = vadd.f32 %v1616, %v1651
        %v1656 = vadd.f32 %v1617, %v1651
        %v1657 = vadd.f32 %v1618, %v1651
        %v1658 = vadd.f32 %v1619, %v1651
        %v1659 = vadd.f32 %v1620, %v1651
        %v1660 = vadd.f32 %v1621, %v1651
        %v1661 = vadd.f32 %v1622, %v1651
        %v1662 = vadd.f32 %v1623, %v1651
        %v1663 = vadd.f32 %v1624, %v1651
        %v1664 = vadd.f32 %v1625, %v1651
        %v1665 = vadd.f32 %v1626, %v1651
        %v1666 = vadd.f32 %v1627, %v1651
        %v1667 = vadd.f32 %v1628, %v1651
        %v1668 = vadd.f32 %v1629, %v1651
        %v1669 = vadd.f32 %v1630, %v1651
        %v1670 = vadd.f32 %v1631, %v1651
        %v1671 = vadd.f32 %v1632, %v1651
        %v1672 = vadd.f32 %v1633, %v1651
        %v1673 = vadd.f32 %v1634, %v1651
        %v1674 = vadd.f32 %v1635, %v1651
        %v1675 = vadd.f32 %v1636, %v1651
        %v1676 = vadd.f32 %v1637, %v1651
        %v1677 = vadd.f32 %v1638, %v1651
        %v1678 = vadd.f32 %v1639, %v1651
        %v1679 = vadd.f32 %v1640, %v1651
        %v1680 = vadd.f32 %v1641, %v1651
        %v1681 = vadd.f32 %v1642, %v1651
        %v1682 = vadd.f32 %v1643, %v1651
        %v1683 = vadd.f32 %v1644, %v1651
        %v1684 = vadd.f32 %v1645, %v1651
        %vm1685 = vcmp.ge.f32.partialorder %v1653, 0.0
        %vm1686 = vcmp.ge.f32.partialorder %v1654, 0.0
        %vm1687 = vcmp.ge.f32.partialorder %v1655, 0.0
        %vm1688 = vcmp.ge.f32.partialorder %v1656, 0.0
        %vm1689 = vcmp.ge.f32.partialorder %v1657, 0.0
        %vm1690 = vcmp.ge.f32.partialorder %v1658, 0.0
        %vm1691 = vcmp.ge.f32.partialorder %v1659, 0.0
        %vm1692 = vcmp.ge.f32.partialorder %v1660, 0.0
        %vm1693 = vcmp.ge.f32.partialorder %v1661, 0.0
        %vm1694 = vcmp.ge.f32.partialorder %v1662, 0.0
        %vm1695 = vcmp.ge.f32.partialorder %v1663, 0.0
        %vm1696 = vcmp.ge.f32.partialorder %v1664, 0.0
        %vm1697 = vcmp.ge.f32.partialorder %v1665, 0.0
        %vm1698 = vcmp.ge.f32.partialorder %v1666, 0.0
        %vm1699 = vcmp.ge.f32.partialorder %v1667, 0.0
        %vm1700 = vcmp.ge.f32.partialorder %v1668, 0.0
        %vm1701 = vcmp.ge.f32.partialorder %v1669, 0.0
        %vm1702 = vcmp.ge.f32.partialorder %v1670, 0.0
        %vm1703 = vcmp.ge.f32.partialorder %v1671, 0.0
        %vm1704 = vcmp.ge.f32.partialorder %v1672, 0.0
        %vm1705 = vcmp.ge.f32.partialorder %v1673, 0.0
        %vm1706 = vcmp.ge.f32.partialorder %v1674, 0.0
        %vm1707 = vcmp.ge.f32.partialorder %v1675, 0.0
        %vm1708 = vcmp.ge.f32.partialorder %v1676, 0.0
        %vm1709 = vcmp.ge.f32.partialorder %v1677, 0.0
        %vm1710 = vcmp.ge.f32.partialorder %v1678, 0.0
        %vm1711 = vcmp.ge.f32.partialorder %v1679, 0.0
        %vm1712 = vcmp.ge.f32.partialorder %v1680, 0.0
        %vm1713 = vcmp.ge.f32.partialorder %v1681, 0.0
        %vm1714 = vcmp.ge.f32.partialorder %v1682, 0.0
        %vm1715 = vcmp.ge.f32.partialorder %v1683, 0.0
        %vm1716 = vcmp.ge.f32.partialorder %v1684, 0.0
        %v1717 = vstv %s319
        %v1718 = vmul.f32 %v1717, %v1653
        %v1719 = vmul.f32 %v1717, %v1654
        %v1720 = vmul.f32 %v1717, %v1655
        %v1721 = vmul.f32 %v1717, %v1656
        %v1722 = vmul.f32 %v1717, %v1657
        %v1723 = vmul.f32 %v1717, %v1658
        %v1724 = vmul.f32 %v1717, %v1659
        %v1725 = vmul.f32 %v1717, %v1660
        %v1726 = vmul.f32 %v1717, %v1661
        %v1727 = vmul.f32 %v1717, %v1662
        %v1728 = vmul.f32 %v1717, %v1663
        %v1729 = vmul.f32 %v1717, %v1664
        %v1730 = vmul.f32 %v1717, %v1665
        %v1731 = vmul.f32 %v1717, %v1666
        %v1732 = vmul.f32 %v1717, %v1667
        %v1733 = vmul.f32 %v1717, %v1668
        %v1734 = vmul.f32 %v1717, %v1669
        %v1735 = vmul.f32 %v1717, %v1670
        %v1736 = vmul.f32 %v1717, %v1671
        %v1737 = vmul.f32 %v1717, %v1672
        %v1738 = vmul.f32 %v1717, %v1673
        %v1739 = vmul.f32 %v1717, %v1674
        %v1740 = vmul.f32 %v1717, %v1675
        %v1741 = vmul.f32 %v1717, %v1676
        %v1742 = vmul.f32 %v1717, %v1677
        %v1743 = vmul.f32 %v1717, %v1678
        %v1744 = vmul.f32 %v1717, %v1679
        %v1745 = vmul.f32 %v1717, %v1680
        %v1746 = vmul.f32 %v1717, %v1681
        %v1747 = vmul.f32 %v1717, %v1682
        %v1748 = vmul.f32 %v1717, %v1683
        %v1749 = vmul.f32 %v1717, %v1684
        %v1750 = vsel %vm1685, %v1653, %v1718
        %v1751 = vsel %vm1686, %v1654, %v1719
        %v1752 = vsel %vm1687, %v1655, %v1720
        %v1753 = vsel %vm1688, %v1656, %v1721
        %v1754 = vsel %vm1689, %v1657, %v1722
        %v1755 = vsel %vm1690, %v1658, %v1723
        %v1756 = vsel %vm1691, %v1659, %v1724
        %v1757 = vsel %vm1692, %v1660, %v1725
        %v1758 = vsel %vm1693, %v1661, %v1726
        %v1759 = vsel %vm1694, %v1662, %v1727
        %v1760 = vsel %vm1695, %v1663, %v1728
        %v1761 = vsel %vm1696, %v1664, %v1729
        %v1762 = vsel %vm1697, %v1665, %v1730
        %v1763 = vsel %vm1698, %v1666, %v1731
        %v1764 = vsel %vm1699, %v1667, %v1732
        %v1765 = vsel %vm1700, %v1668, %v1733
        %v1766 = vsel %vm1701, %v1669, %v1734
        %v1767 = vsel %vm1702, %v1670, %v1735
        %v1768 = vsel %vm1703, %v1671, %v1736
        %v1769 = vsel %vm1704, %v1672, %v1737
        %v1770 = vsel %vm1705, %v1673, %v1738
        %v1771 = vsel %vm1706, %v1674, %v1739
        %v1772 = vsel %vm1707, %v1675, %v1740
        %v1773 = vsel %vm1708, %v1676, %v1741
        %v1774 = vsel %vm1709, %v1677, %v1742
        %v1775 = vsel %vm1710, %v1678, %v1743
        %v1776 = vsel %vm1711, %v1679, %v1744
        %v1777 = vsel %vm1712, %v1680, %v1745
        %v1778 = vsel %vm1713, %v1681, %v1746
        %v1779 = vsel %vm1714, %v1682, %v1747
        %v1780 = vsel %vm1715, %v1683, %v1748
        %v1781 = vsel %vm1716, %v1684, %v1749
        %v1782 = vld [vmem:[%s6] sm:$0xff]
        %v1783 = vld [vmem:[%s6 + $0x8] sm:$0xff]
        %v1784 = vld [vmem:[%s6 + $0x10] sm:$0xff]
        %v1785 = vld [vmem:[%s6 + $0x18] sm:$0xff]
        %v1786 = vld [vmem:[%s6 + $0x20] sm:$0xff]
        %v1787 = vld [vmem:[%s6 + $0x28] sm:$0xff]
        %v1788 = vld [vmem:[%s6 + $0x30] sm:$0xff]
        %v1789 = vld [vmem:[%s6 + $0x38] sm:$0xff]
        %v1790 = vld [vmem:[%s6 + $0x40] sm:$0xff]
        %v1791 = vld [vmem:[%s6 + $0x48] sm:$0xff]
        %v1792 = vld [vmem:[%s6 + $0x50] sm:$0xff]
        %v1793 = vld [vmem:[%s6 + $0x58] sm:$0xff]
        %v1794 = vld [vmem:[%s6 + $0x60] sm:$0xff]
        %v1795 = vld [vmem:[%s6 + $0x68] sm:$0xff]
        %v1796 = vld [vmem:[%s6 + $0x70] sm:$0xff]
        %v1797 = vld [vmem:[%s6 + $0x78] sm:$0xff]
        %v1798 = vld [vmem:[%s7] sm:$0x1]
        %v1800 = vlaneseq
        %v1801 = vshrl.u32 %v1800, 7
        %v1802 = vsub.s32 0, %v1801
        %v1803 = vrot.slane %v1798, %v1802
        %1805 = vmatprep.subr.mxu0 0.0
        %1806 = vmatpush1.msra.mxu0 %v1797
        %1807 = vmatprep.subr.mxu0 0.0
        %1808 = vmatpush1.msra.mxu0 %v1796
        %1809 = vmatprep.subr.mxu0 0.0
        %1810 = vmatpush1.msra.mxu0 %v1795
        %1811 = vmatprep.subr.mxu0 0.0
        %1812 = vmatpush1.msra.mxu0 %v1794
        %1813 = vmatprep.subr.mxu0 0.0
        %1814 = vmatpush1.msra.mxu0 %v1793
        %1815 = vmatprep.subr.mxu0 0.0
        %1816 = vmatpush1.msra.mxu0 %v1792
        %1817 = vmatprep.subr.mxu0 0.0
        %1818 = vmatpush1.msra.mxu0 %v1791
        %1819 = vmatprep.subr.mxu0 0.0
        %1820 = vmatpush1.msra.mxu0 %v1790
        %1821 = vmatprep.subr.mxu0 0.0
        %1822 = vmatpush1.msra.mxu0 %v1789
        %1823 = vmatprep.subr.mxu0 0.0
        %1824 = vmatpush1.msra.mxu0 %v1788
        %1825 = vmatprep.subr.mxu0 0.0
        %1826 = vmatpush1.msra.mxu0 %v1787
        %1827 = vmatprep.subr.mxu0 0.0
        %1828 = vmatpush1.msra.mxu0 %v1786
        %1829 = vmatprep.subr.mxu0 0.0
        %1830 = vmatpush1.msra.mxu0 %v1785
        %1831 = vmatprep.subr.mxu0 0.0
        %1832 = vmatpush1.msra.mxu0 %v1784
        %1833 = vmatprep.subr.mxu0 0.0
        %1834 = vmatpush1.msra.mxu0 %v1783
        %1835 = vmatprep.subr.mxu0 0.0
        %1836 = vmatpush1.msra.mxu0 %v1782
        %1837 = vmatprep.subr.mxu0 0.0
        %1838 = vmatpush2.msra.mxu0 0.0
        %1839 = vmatprep.subr.mxu0 0.0
        %1840 = vmatpush2.msra.mxu0 0.0
        %1841 = vmatprep.subr.mxu0 0.0
        %1842 = vmatpush2.msra.mxu0 0.0
        %1843 = vmatprep.subr.mxu0 0.0
        %1844 = vmatpush2.msra.mxu0 0.0
        %1845 = vmatprep.subr.mxu0 0.0
        %1846 = vmatpush2.msra.mxu0 0.0
        %1847 = vmatprep.subr.mxu0 0.0
        %1848 = vmatpush2.msra.mxu0 0.0
        %1849 = vmatprep.subr.mxu0 0.0
        %1850 = vmatpush2.msra.mxu0 0.0
        %1851 = vmatprep.subr.mxu0 0.0
        %1852 = vmatpush2.msra.mxu0 0.0
        %1853 = vmatprep.subr.mxu0 0.0
        %1854 = vmatpush2.msra.mxu0 0.0
        %1855 = vmatprep.subr.mxu0 0.0
        %1856 = vmatpush2.msra.mxu0 0.0
        %1857 = vmatprep.subr.mxu0 0.0
        %1858 = vmatpush2.msra.mxu0 0.0
        %1859 = vmatprep.subr.mxu0 0.0
        %1860 = vmatpush2.msra.mxu0 0.0
        %1861 = vmatprep.subr.mxu0 0.0
        %1862 = vmatpush2.msra.mxu0 0.0
        %1863 = vmatprep.subr.mxu0 0.0
        %1864 = vmatpush2.msra.mxu0 0.0
        %1865 = vmatprep.subr.mxu0 0.0
        %1866 = vmatpush2.msra.mxu0 0.0
        %1867 = vmatprep.subr.mxu0 0.0
        %1868 = vmatpush2.msra.mxu0 0.0
        %1869 = vmatprep.mubr.f32.mxu0 0.0
        %1870 = vmatmul.mubr.f32.gmra.mxu0 %v1750
        %v1871 = vpop.f32.mrf.mxu0
        %v1872 = vadd.f32 %v1803, %v1871
        %v1873 = vpop.f32.mrf.mxu0
        %1874 = vmatprep.mubr.f32.mxu0 0.0
        %1875 = vmatmul.mubr.f32.gmra.mxu0 %v1751
        %v1876 = vpop.f32.mrf.mxu0
        %v1877 = vadd.f32 %v1803, %v1876
        %v1878 = vpop.f32.mrf.mxu0
        %1879 = vmatprep.mubr.f32.mxu0 0.0
        %1880 = vmatmul.mubr.f32.gmra.mxu0 %v1752
        %v1881 = vpop.f32.mrf.mxu0
        %v1882 = vadd.f32 %v1803, %v1881
        %v1883 = vpop.f32.mrf.mxu0
        %1884 = vmatprep.mubr.f32.mxu0 0.0
        %1885 = vmatmul.mubr.f32.gmra.mxu0 %v1753
        %v1886 = vpop.f32.mrf.mxu0
        %v1887 = vadd.f32 %v1803, %v1886
        %v1888 = vpop.f32.mrf.mxu0
        %1889 = vmatprep.mubr.f32.mxu0 0.0
        %1890 = vmatmul.mubr.f32.gmra.mxu0 %v1754
        %v1891 = vpop.f32.mrf.mxu0
        %v1892 = vadd.f32 %v1803, %v1891
        %v1893 = vpop.f32.mrf.mxu0
        %1894 = vmatprep.mubr.f32.mxu0 0.0
        %1895 = vmatmul.mubr.f32.gmra.mxu0 %v1755
        %v1896 = vpop.f32.mrf.mxu0
        %v1897 = vadd.f32 %v1803, %v1896
        %v1898 = vpop.f32.mrf.mxu0
        %1899 = vmatprep.mubr.f32.mxu0 0.0
        %1900 = vmatmul.mubr.f32.gmra.mxu0 %v1756
        %v1901 = vpop.f32.mrf.mxu0
        %v1902 = vadd.f32 %v1803, %v1901
        %v1903 = vpop.f32.mrf.mxu0
        %1904 = vmatprep.mubr.f32.mxu0 0.0
        %1905 = vmatmul.mubr.f32.gmra.mxu0 %v1757
        %v1906 = vpop.f32.mrf.mxu0
        %v1907 = vadd.f32 %v1803, %v1906
        %v1908 = vpop.f32.mrf.mxu0
        %1909 = vmatprep.mubr.f32.mxu0 0.0
        %1910 = vmatmul.mubr.f32.gmra.mxu0 %v1758
        %v1911 = vpop.f32.mrf.mxu0
        %v1912 = vadd.f32 %v1803, %v1911
        %v1913 = vpop.f32.mrf.mxu0
        %1914 = vmatprep.mubr.f32.mxu0 0.0
        %1915 = vmatmul.mubr.f32.gmra.mxu0 %v1759
        %v1916 = vpop.f32.mrf.mxu0
        %v1917 = vadd.f32 %v1803, %v1916
        %v1918 = vpop.f32.mrf.mxu0
        %1919 = vmatprep.mubr.f32.mxu0 0.0
        %1920 = vmatmul.mubr.f32.gmra.mxu0 %v1760
        %v1921 = vpop.f32.mrf.mxu0
        %v1922 = vadd.f32 %v1803, %v1921
        %v1923 = vpop.f32.mrf.mxu0
        %1924 = vmatprep.mubr.f32.mxu0 0.0
        %1925 = vmatmul.mubr.f32.gmra.mxu0 %v1761
        %v1926 = vpop.f32.mrf.mxu0
        %v1927 = vadd.f32 %v1803, %v1926
        %v1928 = vpop.f32.mrf.mxu0
        %1929 = vmatprep.mubr.f32.mxu0 0.0
        %1930 = vmatmul.mubr.f32.gmra.mxu0 %v1762
        %v1931 = vpop.f32.mrf.mxu0
        %v1932 = vadd.f32 %v1803, %v1931
        %v1933 = vpop.f32.mrf.mxu0
        %1934 = vmatprep.mubr.f32.mxu0 0.0
        %1935 = vmatmul.mubr.f32.gmra.mxu0 %v1763
        %v1936 = vpop.f32.mrf.mxu0
        %v1937 = vadd.f32 %v1803, %v1936
        %v1938 = vpop.f32.mrf.mxu0
        %1939 = vmatprep.mubr.f32.mxu0 0.0
        %1940 = vmatmul.mubr.f32.gmra.mxu0 %v1764
        %v1941 = vpop.f32.mrf.mxu0
        %v1942 = vadd.f32 %v1803, %v1941
        %v1943 = vpop.f32.mrf.mxu0
        %1944 = vmatprep.mubr.f32.mxu0 0.0
        %1945 = vmatmul.mubr.f32.gmra.mxu0 %v1765
        %v1946 = vpop.f32.mrf.mxu0
        %v1947 = vadd.f32 %v1803, %v1946
        %v1948 = vpop.f32.mrf.mxu0
        %1949 = vmatprep.mubr.f32.mxu0 0.0
        %1950 = vmatmul.mubr.f32.gmra.mxu0 %v1766
        %v1951 = vpop.f32.mrf.mxu0
        %v1952 = vadd.f32 %v1803, %v1951
        %v1953 = vpop.f32.mrf.mxu0
        %1954 = vmatprep.mubr.f32.mxu0 0.0
        %1955 = vmatmul.mubr.f32.gmra.mxu0 %v1767
        %v1956 = vpop.f32.mrf.mxu0
        %v1957 = vadd.f32 %v1803, %v1956
        %v1958 = vpop.f32.mrf.mxu0
        %1959 = vmatprep.mubr.f32.mxu0 0.0
        %1960 = vmatmul.mubr.f32.gmra.mxu0 %v1768
        %v1961 = vpop.f32.mrf.mxu0
        %v1962 = vadd.f32 %v1803, %v1961
        %v1963 = vpop.f32.mrf.mxu0
        %1964 = vmatprep.mubr.f32.mxu0 0.0
        %1965 = vmatmul.mubr.f32.gmra.mxu0 %v1769
        %v1966 = vpop.f32.mrf.mxu0
        %v1967 = vadd.f32 %v1803, %v1966
        %v1968 = vpop.f32.mrf.mxu0
        %1969 = vmatprep.mubr.f32.mxu0 0.0
        %1970 = vmatmul.mubr.f32.gmra.mxu0 %v1770
        %v1971 = vpop.f32.mrf.mxu0
        %v1972 = vadd.f32 %v1803, %v1971
        %v1973 = vpop.f32.mrf.mxu0
        %1974 = vmatprep.mubr.f32.mxu0 0.0
        %1975 = vmatmul.mubr.f32.gmra.mxu0 %v1771
        %v1976 = vpop.f32.mrf.mxu0
        %v1977 = vadd.f32 %v1803, %v1976
        %v1978 = vpop.f32.mrf.mxu0
        %1979 = vmatprep.mubr.f32.mxu0 0.0
        %1980 = vmatmul.mubr.f32.gmra.mxu0 %v1772
        %v1981 = vpop.f32.mrf.mxu0
        %v1982 = vadd.f32 %v1803, %v1981
        %v1983 = vpop.f32.mrf.mxu0
        %1984 = vmatprep.mubr.f32.mxu0 0.0
        %1985 = vmatmul.mubr.f32.gmra.mxu0 %v1773
        %v1986 = vpop.f32.mrf.mxu0
        %v1987 = vadd.f32 %v1803, %v1986
        %v1988 = vpop.f32.mrf.mxu0
        %1989 = vmatprep.mubr.f32.mxu0 0.0
        %1990 = vmatmul.mubr.f32.gmra.mxu0 %v1774
        %v1991 = vpop.f32.mrf.mxu0
        %v1992 = vadd.f32 %v1803, %v1991
        %v1993 = vpop.f32.mrf.mxu0
        %1994 = vmatprep.mubr.f32.mxu0 0.0
        %1995 = vmatmul.mubr.f32.gmra.mxu0 %v1775
        %v1996 = vpop.f32.mrf.mxu0
        %v1997 = vadd.f32 %v1803, %v1996
        %v1998 = vpop.f32.mrf.mxu0
        %1999 = vmatprep.mubr.f32.mxu0 0.0
        %2000 = vmatmul.mubr.f32.gmra.mxu0 %v1776
        %v2001 = vpop.f32.mrf.mxu0
        %v2002 = vadd.f32 %v1803, %v2001
        %v2003 = vpop.f32.mrf.mxu0
        %2004 = vmatprep.mubr.f32.mxu0 0.0
        %2005 = vmatmul.mubr.f32.gmra.mxu0 %v1777
        %v2006 = vpop.f32.mrf.mxu0
        %v2007 = vadd.f32 %v1803, %v2006
        %v2008 = vpop.f32.mrf.mxu0
        %2009 = vmatprep.mubr.f32.mxu0 0.0
        %2010 = vmatmul.mubr.f32.gmra.mxu0 %v1778
        %v2011 = vpop.f32.mrf.mxu0
        %v2012 = vadd.f32 %v1803, %v2011
        %v2013 = vpop.f32.mrf.mxu0
        %2014 = vmatprep.mubr.f32.mxu0 0.0
        %2015 = vmatmul.mubr.f32.gmra.mxu0 %v1779
        %v2016 = vpop.f32.mrf.mxu0
        %v2017 = vadd.f32 %v1803, %v2016
        %v2018 = vpop.f32.mrf.mxu0
        %2019 = vmatprep.mubr.f32.mxu0 0.0
        %2020 = vmatmul.mubr.f32.gmra.mxu0 %v1780
        %v2021 = vpop.f32.mrf.mxu0
        %v2022 = vadd.f32 %v1803, %v2021
        %v2023 = vpop.f32.mrf.mxu0
        %2024 = vmatprep.mubr.f32.mxu0 0.0
        %2025 = vmatmul.mubr.f32.gmra.mxu0 %v1781
        %v2026 = vpop.f32.mrf.mxu0
        %v2027 = vadd.f32 %v1803, %v2026
        %v2028 = vpop.f32.mrf.mxu0
        %2029 = vdwg.mxu0
        %2030 = vst [vmem:[%s312] sm:$0xff] %v1872
        %2031 = vst [vmem:[%s312 + $0x8] sm:$0xff] %v1877
        %2032 = vst [vmem:[%s312 + $0x10] sm:$0xff] %v1882
        %2033 = vst [vmem:[%s312 + $0x18] sm:$0xff] %v1887
        %2034 = vst [vmem:[%s312 + $0x20] sm:$0xff] %v1892
        %2035 = vst [vmem:[%s312 + $0x28] sm:$0xff] %v1897
        %2036 = vst [vmem:[%s312 + $0x30] sm:$0xff] %v1902
        %2037 = vst [vmem:[%s312 + $0x38] sm:$0xff] %v1907
        %2038 = vst [vmem:[%s312 + $0x40] sm:$0xff] %v1912
        %2039 = vst [vmem:[%s312 + $0x48] sm:$0xff] %v1917
        %2040 = vst [vmem:[%s312 + $0x50] sm:$0xff] %v1922
        %2041 = vst [vmem:[%s312 + $0x58] sm:$0xff] %v1927
        %2042 = vst [vmem:[%s312 + $0x60] sm:$0xff] %v1932
        %2043 = vst [vmem:[%s312 + $0x68] sm:$0xff] %v1937
        %2044 = vst [vmem:[%s312 + $0x70] sm:$0xff] %v1942
        %2045 = vst [vmem:[%s312 + $0x78] sm:$0xff] %v1947
        %2046 = vst [vmem:[%s312 + $0x80] sm:$0xff] %v1952
        %2047 = vst [vmem:[%s312 + $0x88] sm:$0xff] %v1957
        %2048 = vst [vmem:[%s312 + $0x90] sm:$0xff] %v1962
        %2049 = vst [vmem:[%s312 + $0x98] sm:$0xff] %v1967
        %2050 = vst [vmem:[%s312 + $0xa0] sm:$0xff] %v1972
        %2051 = vst [vmem:[%s312 + $0xa8] sm:$0xff] %v1977
        %2052 = vst [vmem:[%s312 + $0xb0] sm:$0xff] %v1982
        %2053 = vst [vmem:[%s312 + $0xb8] sm:$0xff] %v1987
        %2054 = vst [vmem:[%s312 + $0xc0] sm:$0xff] %v1992
        %2055 = vst [vmem:[%s312 + $0xc8] sm:$0xff] %v1997
        %2056 = vst [vmem:[%s312 + $0xd0] sm:$0xff] %v2002
        %2057 = vst [vmem:[%s312 + $0xd8] sm:$0xff] %v2007
        %2058 = vst [vmem:[%s312 + $0xe0] sm:$0xff] %v2012
        %2059 = vst [vmem:[%s312 + $0xe8] sm:$0xff] %v2017
        %2060 = vst [vmem:[%s312 + $0xf0] sm:$0xff] %v2022
        %2061 = vst [vmem:[%s312 + $0xf8] sm:$0xff] %v2027
        %s2062 = sand.u32 %s204, 1
        %s2063 = scalar_lea.sflag [#allocation4], %s2062
        %s2064 = sand.u32 %s204, 1
        %s2065 = smul.addr %s2064, 256
        %s2066 = scalar_lea.vmem [#allocation6], %s2065
        // Predicated region
        $region57: #{fused_bottleneck.1} parent=51 // pred_check
          %p2067 = pneg %p214
        $region58: #{fused_bottleneck.1} parent=51 // pred_check_branch
          %2069 = sbr.rel (%p2067) target = $region60
        $region59: #{fused_bottleneck.1} parent=51 // pred_region
          %s2071 = ssub.s32 4096, 4096
          %2072 = vsyncadd %s2063, %s2071
          %s2073 = smul.addr %s23, 32
          %s2074 = smul.addr %s2073, 128
          %s2075 = scalar_lea.hbm %s8, %s2074
          %s2076 = sshll.u32 %s2066, 4
          %s2077 = int_to_ptr.vmem [resolvable:$true] %s2076
          %2082 = dma.vmem_to_hbm [thread:$0]  %s2077, 4096, %s2075, %s2063, 128, 128, 8
        $region60: #{fused_bottleneck.1} parent=51 // pred_fallthru
          _
      $region52: #{fused_bottleneck.1} parent=5 // pred_fallthru
        _
      %p2083 = scmp.le.s32.totalorder 2, %s18
      // Predicated region
      $region61: #{fused_bottleneck.1} parent=5 // pred_check
        %p2084 = pneg %p2083
      $region62: #{fused_bottleneck.1} parent=5 // pred_check_branch
        %2086 = sbr.rel (%p2084) target = $region64
      $region63: #{fused_bottleneck.1} parent=5 // pred_region
        %s2087 = ssub.s32 %s18, 2
        // Predicated region
        $region65: #{fused_bottleneck.1} parent=63 // pred_check
          %p2088 = pneg %p220
        $region66: #{fused_bottleneck.1} parent=63 // pred_check_branch
          %2090 = sbr.rel (%p2088) target = $region68
        $region67: #{fused_bottleneck.1} parent=63 // pred_region
          %s2091 = sand.u32 %s205, 1
          %s2092 = scalar_lea.sflag [#allocation4], %s2091
          %s2093 = sand.u32 %s205, 1
          %s2094 = smul.addr %s2093, 256
          %s2095 = scalar_lea.vmem [#allocation6], %s2094
          %2096 = dma.done %s2092, 4096
        $region68: #{fused_bottleneck.1} parent=63 // pred_fallthru
          _
      $region64: #{fused_bottleneck.1} parent=5 // pred_fallthru
        _
    $region6: #{fused_bottleneck.1} parent=1 // loop_footer
      %s22 = sadd.s32 1, %s18
    $region7: #{fused_bottleneck.1} parent=1 // loop_footer_branch
      %17 = sbr.rel target = $region3
    $region8: #{fused_bottleneck.1} parent=1 // loop_exit
      _
    %2097 = vsyncpa [#allocation4], 1
    %s2098 = scalar_lea.sflag [#allocation4], 1
    %2099 = vsyncpa %s2098, 1
    %2100 = vsyncpa [#allocation5], 1
    %s2101 = scalar_lea.sflag [#allocation5], 1
    %2102 = vsyncpa %s2101, 1

</llo_original>
